<compile_context>
chip_gen: v7x
topology: tpu7x:2x2x1
jax: 0.10.0
libtpu: 0.0.40
codegen_flags: <defaults>
</compile_context>

<pallas_src>
import math

import jax
import jax.numpy as jnp
import numpy as np
from jax.experimental import pallas as pl
from jax.experimental.pallas import tpu as pltpu  # noqa: F401  (TPU backend)

# ---------------- problem sizes (small, consistent with the module) -----------
B = 2                       # batch
N = 16                      # number of points
BN = B * N                  # flattened rows processed in one kernel step
DIM = 32                    # feature channels C
NUM_HEADS = 8
HEAD_DIM = DIM // NUM_HEADS
MLP_HIDDEN = int(DIM * 4.0)           # 128
SCALE = HEAD_DIM ** (-0.5)
LN_EPS = 1e-5

POS_IN = 3
POS_PAD = 8                 # pad xyz to 8 lanes -> K=8 matmul
LANES = 128                 # lane width of activations / weight & bias slabs
HBN = NUM_HEADS * BN        # 256: lane width of the score slab

# ---- weight-slab row offsets (multiples of 8 -> sublane-aligned slices) -------
R_POS1 = 0                              # ( 8, 128)  pos Linear(3->C), zero-padded rows
R_POS2 = R_POS1 + POS_PAD               # ( 32,128)  pos Linear(C->C)
R_QKV = R_POS2 + DIM                    # ( 32,128)  fused QKV (scale folded into q cols)
R_PROJ = R_QKV + DIM                    # ( 32,128)  output projection
R_MLP1 = R_PROJ + DIM                   # ( 32,128)  MLP Linear(C->4C)
R_MLP2 = R_MLP1 + DIM                   # (128,128)  MLP Linear(4C->C)
W_ROWS = R_MLP2 + MLP_HIDDEN            # 264

# ---- bias / LayerNorm / valid-lane slab rows ----------------------------------
(B_POS1, B_POS2, B_G1, B_BE1, B_QKV,
 B_PROJ, B_G2, B_BE2, B_MLP1, B_MLP2, B_VALID) = range(11)
B_ROWS = 16

# ---- attention constant slab row offsets ---------------------------------------
KM_ROW = 0                  # kmask  (DIM, HBN)
BM_ROW = DIM                # bmask  (BN,  HBN)   (BN == DIM == 32 here)
KS_ROW = 2 * DIM            # kscat  (BN,  HBN)
WIDE_ROWS = 3 * DIM         # 96
VM_ROW = 0                  # vmask  (HBN, DIM)
VS_ROW = HBN                # vscat  (HBN, BN)
TALL_ROWS = 2 * HBN         # 512


# ----------------------------- Pallas kernel ----------------------------------
def point_transformer_kernel(x_ref, pos_ref, w_ref, b_ref, wide_ref, tall_ref, o_ref):
    x = x_ref[...]                       # (BN, 128); lanes >= DIM are zero
    pos = pos_ref[...]                   # (BN, 8);   lanes >= 3 are zero

    # --- static, sublane-aligned, full-128-lane weight slices -----------------
    wpos1 = w_ref[R_POS1:R_POS1 + POS_PAD, :]
    wpos2 = w_ref[R_POS2:R_POS2 + DIM, :]
    wqkv = w_ref[R_QKV:R_QKV + DIM, :]
    wp = w_ref[R_PROJ:R_PROJ + DIM, :]
    wm1 = w_ref[R_MLP1:R_MLP1 + DIM, :]
    wm2 = w_ref[R_MLP2:R_MLP2 + MLP_HIDDEN, :]

    bias = b_ref[...]                    # (16, 128) -- 2 vregs, load once

    def brow(i):
        return bias[i:i + 1, :]          # (1, 128) full-lane row

    bpos1, bpos2 = brow(B_POS1), brow(B_POS2)
    g1, be1 = brow(B_G1), brow(B_BE1)
    bqkv, bp = brow(B_QKV), brow(B_PROJ)
    g2, be2 = brow(B_G2), brow(B_BE2)
    bm1, bm2 = brow(B_MLP1), brow(B_MLP2)
    valid = brow(B_VALID)                # 1.0 in lanes < DIM, 0.0 elsewhere

    # host-precomputed attention constants (no iota / compare / where in-kernel)
    kmask = wide_ref[KM_ROW:KM_ROW + DIM, :]      # (DIM, HBN) head-channel mask
    bmask = wide_ref[BM_ROW:BM_ROW + BN, :]       # (BN,  HBN) 0 / -1e30 batch mask
    kscat = wide_ref[KS_ROW:KS_ROW + BN, :]       # (BN,  HBN) tile/scatter for K
    vmask = tall_ref[VM_ROW:VM_ROW + HBN, :]      # (HBN, DIM) head-scatter mask for V
    vscat = tall_ref[VS_ROW:VS_ROW + HBN, :]      # (HBN, BN)  tile/scatter for V

    inv_dim = 1.0 / DIM

    # ---- positional MLP: Linear(3->C) -> ReLU -> Linear(C->C) -----------------
    h = jnp.dot(pos, wpos1, preferred_element_type=jnp.float32) + bpos1
    h = jnp.maximum(h, 0.0)                                               # (BN,128)
    pos_enc = jnp.dot(h[:, :DIM], wpos2,
                      preferred_element_type=jnp.float32) + bpos2        # (BN,128)

    # ---- LayerNorm1 (padded lanes stay exactly zero) ---------------------------
    mu = jnp.sum(x, axis=-1, keepdims=True) * inv_dim
    d = (x - mu) * valid
    var = jnp.sum(d * d, axis=-1, keepdims=True) * inv_dim
    xn = d * jax.lax.rsqrt(var + LN_EPS) * g1 + be1                      # (BN,128)

    # ---- fused QKV projection (attention SCALE pre-folded into q columns) ------
    xin = xn + pos_enc
    qkv = jnp.dot(xin[:, :DIM], wqkv,
                  preferred_element_type=jnp.float32) + bqkv             # (BN,128)
    q = qkv[:, 0:DIM]                     # (BN, DIM)  lanes already at offset 0
    v = qkv[:, 2 * DIM:3 * DIM]           # (BN, DIM)
    qkv_t = qkv.T                         # (128, BN)  -- the single transpose
    k_t = qkv_t[DIM:2 * DIM, :]           # (DIM, BN)  sublane-aligned row slice

    # ---- lane-dense multi-head attention ---------------------------------------
    # K expansion built on the MXU: k_exp[c, h*BN+m] = k[m, c] * (c in head h)
    k_exp = jnp.dot(k_t, kscat, preferred_element_type=jnp.float32) * kmask   # (DIM,HBN)
    s = jnp.dot(q, k_exp, preferred_element_type=jnp.float32) + bmask         # (BN, HBN)
    s = s - jnp.max(s, axis=-1, keepdims=True)    # row-wide max (scores are O(1))
    p = jnp.exp(s)                                # masked columns -> exactly 0

    # V expansion on the MXU: v_exp[h*BN+m, c] = v[m, c] * (c in head h)
    v_exp = jnp.dot(vscat, v, preferred_element_type=jnp.float32) * vmask     # (HBN,DIM)
    num = jnp.dot(p, v_exp, preferred_element_type=jnp.float32)               # (BN, DIM)
    den = jnp.dot(p, vmask, preferred_element_type=jnp.float32)               # (BN, DIM)
    attn_out = num * pl.reciprocal(den, approx=True)    # flash-style deferred norm
    # attn / proj dropout are identity at inference

    # ---- output projection + residual ------------------------------------------
    proj = jnp.dot(attn_out, wp, preferred_element_type=jnp.float32) + bp     # (BN,128)
    x1 = x + proj

    # ---- LayerNorm2 --------------------------------------------------------------
    mu2 = jnp.sum(x1, axis=-1, keepdims=True) * inv_dim
    d2 = (x1 - mu2) * valid
    var2 = jnp.sum(d2 * d2, axis=-1, keepdims=True) * inv_dim
    x2n = d2 * jax.lax.rsqrt(var2 + LN_EPS) * g2 + be2

    # ---- feed-forward MLP: Linear(C->4C) -> ReLU -> Linear(4C->C) ----------------
    hm = jnp.maximum(jnp.dot(x2n[:, :DIM], wm1,
                             preferred_element_type=jnp.float32) + bm1, 0.0)  # (BN,128)
    mlp_out = jnp.dot(hm, wm2, preferred_element_type=jnp.float32) + bm2      # (BN,128)

    o_ref[...] = (x1 + mlp_out).astype(o_ref.dtype)   # unmasked full-lane store


# ------------------------------- wrapper ---------------------------------------
def point_transformer_block(x, pos, w_slab, b_slab, attn_wide, attn_tall):
    """x: (B, N, C) f32, pos: (B, N, 3) f32 -> (B, N, C) f32."""
    x2 = jnp.zeros((BN, LANES), jnp.float32).at[:, :DIM].set(x.reshape(BN, DIM))
    pos2 = jnp.zeros((BN, POS_PAD), jnp.float32).at[:, :POS_IN].set(
        pos.reshape(BN, POS_IN))

    # Single kernel step, no grid: the whole ~350 KiB working set is VMEM
    # resident on every generation.
    # TODO(synk): when batching many point clouds per call (BN >= 256), add a
    # grid over row tiles (weights/masks pinned with index_map=lambda i: (0, 0)),
    # mark the row axis "parallel" so v7x's second TensorCore takes half the
    # grid, and re-derive tile sizes against v7x's 64 MiB VMEM.
    # TODO(synk): if this block is one layer of a stack, keep w_slab/b_slab
    # VMEM-resident across calls (or prefetch the next layer's slab via a
    # cross-call DMA future) so the weight DMA latency is not exposed.
    out = pl.pallas_call(
        point_transformer_kernel,
        out_shape=jax.ShapeDtypeStruct((BN, LANES), jnp.float32),
    )(x2, pos2, w_slab, b_slab, attn_wide, attn_tall)
    return out[:, :DIM].reshape(B, N, DIM)


# --------------------------- parameter construction ----------------------------
def make_params(key):
    """Deterministic synthetic weights (PyTorch Linear weights pre-transposed to
    (in, out)); LayerNorm gamma=1, beta=0 as in __init__."""
    keys = jax.random.split(key, 6)

    def linear(k, fan_in, fan_out):
        bound = 1.0 / math.sqrt(fan_in)
        kw, kb = jax.random.split(k)
        w = jax.random.uniform(kw, (fan_in, fan_out), jnp.float32, -bound, bound)
        b = jax.random.uniform(kb, (1, fan_out), jnp.float32, -bound, bound)
        return w, b

    wpos1, bpos1 = linear(keys[0], 3, DIM)
    wpos2, bpos2 = linear(keys[1], DIM, DIM)
    wqkv, bqkv = linear(keys[2], DIM, 3 * DIM)      # fused, as in the torch module
    wp, bp = linear(keys[3], DIM, DIM)
    wm1, bm1 = linear(keys[4], DIM, MLP_HIDDEN)
    wm2, bm2 = linear(keys[5], MLP_HIDDEN, DIM)

    return dict(
        wpos1=wpos1, bpos1=bpos1, wpos2=wpos2, bpos2=bpos2,
        wqkv=wqkv, bqkv=bqkv,
        wp=wp, bp=bp,
        g1=jnp.ones((1, DIM), jnp.float32), be1=jnp.zeros((1, DIM), jnp.float32),
        g2=jnp.ones((1, DIM), jnp.float32), be2=jnp.zeros((1, DIM), jnp.float32),
        wm1=wm1, bm1=bm1, wm2=wm2, bm2=bm2,
    )


def pack_params(p):
    """Pack all weights/biases into two lane-dense f32 slabs (done offline)."""
    # fold the attention scale into the q-columns of the fused QKV weight/bias
    qscale = jnp.concatenate([jnp.full((DIM,), SCALE, jnp.float32),
                              jnp.ones((2 * DIM,), jnp.float32)])
    wqkv = p["wqkv"] * qscale[None, :]
    bqkv = p["bqkv"] * qscale[None, :]

    w = jnp.zeros((W_ROWS, LANES), jnp.float32)
    w = w.at[R_POS1:R_POS1 + POS_IN, :DIM].set(p["wpos1"])   # rows 3..7 stay zero
    w = w.at[R_POS2:R_POS2 + DIM, :DIM].set(p["wpos2"])
    w = w.at[R_QKV:R_QKV + DIM, :3 * DIM].set(wqkv)
    w = w.at[R_PROJ:R_PROJ + DIM, :DIM].set(p["wp"])
    w = w.at[R_MLP1:R_MLP1 + DIM, :MLP_HIDDEN].set(p["wm1"])
    w = w.at[R_MLP2:R_MLP2 + MLP_HIDDEN, :DIM].set(p["wm2"])

    b = jnp.zeros((B_ROWS, LANES), jnp.float32)
    b = b.at[B_POS1, :DIM].set(p["bpos1"][0])
    b = b.at[B_POS2, :DIM].set(p["bpos2"][0])
    b = b.at[B_G1, :DIM].set(p["g1"][0])
    b = b.at[B_BE1, :DIM].set(p["be1"][0])
    b = b.at[B_QKV, :3 * DIM].set(bqkv[0])
    b = b.at[B_PROJ, :DIM].set(p["bp"][0])
    b = b.at[B_G2, :DIM].set(p["g2"][0])
    b = b.at[B_BE2, :DIM].set(p["be2"][0])
    b = b.at[B_MLP1, :MLP_HIDDEN].set(p["bm1"][0])
    b = b.at[B_MLP2, :DIM].set(p["bm2"][0])
    b = b.at[B_VALID, :DIM].set(1.0)
    return w, b


def make_attention_constants():
    """Host-precomputed masks / scatter matrices for the lane-dense attention."""
    head_of_c = np.arange(DIM) // HEAD_DIM            # (DIM,)  head of channel c
    head_of_col = np.arange(HBN) // BN                # (HBN,)  head of score column
    point_of_col = np.arange(HBN) % BN                # (HBN,)  point of score column

    # kmask[c, h*BN+m] = 1 iff channel c belongs to head h
    kmask = (head_of_c[:, None] == head_of_col[None, :]).astype(np.float32)
    # bmask[n, h*BN+m] = 0 if points n and m are in the same batch item else -1e30
    same_batch = (np.arange(BN) // N)[:, None] == (point_of_col // N)[None, :]
    bmask = np.where(same_batch, np.float32(0.0), np.float32(-1e30))
    # kscat[m, h*BN+m'] = 1 iff m == m'   (MXU tile/scatter of k^T along lanes)
    kscat = (np.arange(BN)[:, None] == point_of_col[None, :]).astype(np.float32)
    attn_wide = jnp.asarray(np.concatenate([kmask, bmask, kscat], axis=0))  # (96, 256)

    # vmask[h*BN+m, c] = 1 iff channel c belongs to head h
    vmask = (head_of_col[:, None] == head_of_c[None, :]).astype(np.float32)
    # vscat[h*BN+m, m'] = 1 iff m == m'   (MXU tile/scatter of v along sublanes)
    vscat = (point_of_col[:, None] == np.arange(BN)[None, :]).astype(np.float32)
    attn_tall = jnp.asarray(np.concatenate([vmask, vscat], axis=0))         # (512, 32)
    return attn_wide, attn_tall


# ------------------------------ pure-JAX reference ------------------------------
def reference(x, pos, p):
    def ln(z, g, b):
        mu = jnp.mean(z, axis=-1, keepdims=True)
        var = jnp.mean((z - mu) ** 2, axis=-1, keepdims=True)
        return (z - mu) / jnp.sqrt(var + LN_EPS) * g + b

    pos_enc = jnp.maximum(pos @ p["wpos1"] + p["bpos1"], 0.0) @ p["wpos2"] + p["bpos2"]
    shortcut = x
    xin = ln(x, p["g1"], p["be1"]) + pos_enc
    qkv = xin @ p["wqkv"] + p["bqkv"]
    q, k, v = qkv[..., :DIM], qkv[..., DIM:2 * DIM], qkv[..., 2 * DIM:]

    def split_heads(t):
        return t.reshape(B, N, NUM_HEADS, HEAD_DIM).transpose(0, 2, 1, 3)

    q, k, v = split_heads(q), split_heads(k), split_heads(v)
    att = jax.nn.softmax((q @ k.transpose(0, 1, 3, 2)) * SCALE, axis=-1)
    o = (att @ v).transpose(0, 2, 1, 3).reshape(B, N, DIM)
    x1 = shortcut + o @ p["wp"] + p["bp"]
    mlp = jnp.maximum(ln(x1, p["g2"], p["be2"]) @ p["wm1"] + p["bm1"], 0.0) @ p["wm2"] + p["bm2"]
    return x1 + mlp


# ------------------------------------ main --------------------------------------
if __name__ == "__main__":
    key = jax.random.PRNGKey(0)
    kx, kp, kw = jax.random.split(key, 3)

    x = jax.random.normal(kx, (B, N, DIM), jnp.float32)
    pos = jax.random.normal(kp, (B, N, 3), jnp.float32)
    params = make_params(kw)
    w_slab, b_slab = pack_params(params)
    attn_wide, attn_tall = make_attention_constants()

    out = point_transformer_block(x, pos, w_slab, b_slab, attn_wide, attn_tall)
    out = jax.block_until_ready(out)

    ref = jax.block_until_ready(reference(x, pos, params))
    # Tolerance 1e-3: the only approximation vs. the f32 reference is the EUP
    # approximate reciprocal in the softmax denominator; the row-wide max shift
    # is mathematically equivalent to the per-segment max and all other math is
    # exact f32.
    np.testing.assert_allclose(np.asarray(out), np.asarray(ref), rtol=1e-3, atol=1e-3)

    print("KERNEL_OK")
</pallas_src>

<mosaic_0001>
module attributes {stable_mosaic.version = 11 : i64} {
  func.func @point_transformer_kernel(%arg0: memref<32x128xf32, #tpu.memory_space<vmem>>, %arg1: memref<32x8xf32, #tpu.memory_space<vmem>>, %arg2: memref<264x128xf32, #tpu.memory_space<vmem>>, %arg3: memref<16x128xf32, #tpu.memory_space<vmem>>, %arg4: memref<96x256xf32, #tpu.memory_space<vmem>>, %arg5: memref<512x32xf32, #tpu.memory_space<vmem>>, %arg6: memref<32x128xf32, #tpu.memory_space<vmem>>) attributes {dimension_semantics = [], scalar_prefetch = 0 : i64, scratch_operands = 0 : i64, tpu.core_type = #tpu.core_type<tc>} {
    %c0 = arith.constant 0 : index
    %c0_0 = arith.constant 0 : index
    %0 = vector.load %arg0[%c0, %c0_0] : memref<32x128xf32, #tpu.memory_space<vmem>>, vector<32x128xf32>
    %c0_1 = arith.constant 0 : index
    %c0_2 = arith.constant 0 : index
    %1 = vector.load %arg1[%c0_1, %c0_2] : memref<32x8xf32, #tpu.memory_space<vmem>>, vector<32x8xf32>
    %c0_3 = arith.constant 0 : index
    %c0_4 = arith.constant 0 : index
    %2 = vector.load %arg2[%c0_3, %c0_4] : memref<264x128xf32, #tpu.memory_space<vmem>>, vector<8x128xf32>
    %c8 = arith.constant 8 : index
    %c0_5 = arith.constant 0 : index
    %3 = vector.load %arg2[%c8, %c0_5] : memref<264x128xf32, #tpu.memory_space<vmem>>, vector<32x128xf32>
    %c40 = arith.constant 40 : index
    %c0_6 = arith.constant 0 : index
    %4 = vector.load %arg2[%c40, %c0_6] : memref<264x128xf32, #tpu.memory_space<vmem>>, vector<32x128xf32>
    %c72 = arith.constant 72 : index
    %c0_7 = arith.constant 0 : index
    %5 = vector.load %arg2[%c72, %c0_7] : memref<264x128xf32, #tpu.memory_space<vmem>>, vector<32x128xf32>
    %c104 = arith.constant 104 : index
    %c0_8 = arith.constant 0 : index
    %6 = vector.load %arg2[%c104, %c0_8] : memref<264x128xf32, #tpu.memory_space<vmem>>, vector<32x128xf32>
    %c136 = arith.constant 136 : index
    %c0_9 = arith.constant 0 : index
    %7 = vector.load %arg2[%c136, %c0_9] : memref<264x128xf32, #tpu.memory_space<vmem>>, vector<128x128xf32>
    %c0_10 = arith.constant 0 : index
    %c0_11 = arith.constant 0 : index
    %8 = vector.load %arg3[%c0_10, %c0_11] : memref<16x128xf32, #tpu.memory_space<vmem>>, vector<16x128xf32>
    %9 = vector.extract_strided_slice %8 {offsets = [0, 0], sizes = [1, 128], strides = [1, 1]} : vector<16x128xf32> to vector<1x128xf32>
    %10 = vector.extract_strided_slice %8 {offsets = [1, 0], sizes = [1, 128], strides = [1, 1]} : vector<16x128xf32> to vector<1x128xf32>
    %11 = vector.extract_strided_slice %8 {offsets = [2, 0], sizes = [1, 128], strides = [1, 1]} : vector<16x128xf32> to vector<1x128xf32>
    %12 = vector.extract_strided_slice %8 {offsets = [3, 0], sizes = [1, 128], strides = [1, 1]} : vector<16x128xf32> to vector<1x128xf32>
    %13 = vector.extract_strided_slice %8 {offsets = [4, 0], sizes = [1, 128], strides = [1, 1]} : vector<16x128xf32> to vector<1x128xf32>
    %14 = vector.extract_strided_slice %8 {offsets = [5, 0], sizes = [1, 128], strides = [1, 1]} : vector<16x128xf32> to vector<1x128xf32>
    %15 = vector.extract_strided_slice %8 {offsets = [6, 0], sizes = [1, 128], strides = [1, 1]} : vector<16x128xf32> to vector<1x128xf32>
    %16 = vector.extract_strided_slice %8 {offsets = [7, 0], sizes = [1, 128], strides = [1, 1]} : vector<16x128xf32> to vector<1x128xf32>
    %17 = vector.extract_strided_slice %8 {offsets = [8, 0], sizes = [1, 128], strides = [1, 1]} : vector<16x128xf32> to vector<1x128xf32>
    %18 = vector.extract_strided_slice %8 {offsets = [9, 0], sizes = [1, 128], strides = [1, 1]} : vector<16x128xf32> to vector<1x128xf32>
    %19 = vector.extract_strided_slice %8 {offsets = [10, 0], sizes = [1, 128], strides = [1, 1]} : vector<16x128xf32> to vector<1x128xf32>
    %c0_12 = arith.constant 0 : index
    %c0_13 = arith.constant 0 : index
    %20 = vector.load %arg4[%c0_12, %c0_13] : memref<96x256xf32, #tpu.memory_space<vmem>>, vector<32x256xf32>
    %c32 = arith.constant 32 : index
    %c0_14 = arith.constant 0 : index
    %21 = vector.load %arg4[%c32, %c0_14] : memref<96x256xf32, #tpu.memory_space<vmem>>, vector<32x256xf32>
    %c64 = arith.constant 64 : index
    %c0_15 = arith.constant 0 : index
    %22 = vector.load %arg4[%c64, %c0_15] : memref<96x256xf32, #tpu.memory_space<vmem>>, vector<32x256xf32>
    %c0_16 = arith.constant 0 : index
    %c0_17 = arith.constant 0 : index
    %23 = vector.load %arg5[%c0_16, %c0_17] : memref<512x32xf32, #tpu.memory_space<vmem>>, vector<256x32xf32>
    %c256 = arith.constant 256 : index
    %c0_18 = arith.constant 0 : index
    %24 = vector.load %arg5[%c256, %c0_18] : memref<512x32xf32, #tpu.memory_space<vmem>>, vector<256x32xf32>
    %cst = arith.constant dense<0.000000e+00> : vector<32x128xf32>
    %25 = tpu.matmul %1, %2, %cst {dimension_numbers = #tpu.dot_dimension_numbers<[1], [0], [0], [1], [0, 0, 1, 1], [], []>} : vector<32x8xf32>, vector<8x128xf32>, vector<32x128xf32> -> vector<32x128xf32>
    %26 = vector.broadcast %9 : vector<1x128xf32> to vector<32x128xf32>
    %27 = arith.addf %25, %26 : vector<32x128xf32>
    %cst_19 = arith.constant 0.000000e+00 : f32
    %28 = vector.broadcast %cst_19 : f32 to vector<32x128xf32>
    %29 = arith.maximumf %27, %28 : vector<32x128xf32>
    %30 = vector.extract_strided_slice %29 {offsets = [0, 0], sizes = [32, 32], strides = [1, 1]} : vector<32x128xf32> to vector<32x32xf32>
    %cst_20 = arith.constant dense<0.000000e+00> : vector<32x128xf32>
    %31 = tpu.matmul %30, %3, %cst_20 {dimension_numbers = #tpu.dot_dimension_numbers<[1], [0], [0], [1], [0, 0, 1, 1], [], []>} : vector<32x32xf32>, vector<32x128xf32>, vector<32x128xf32> -> vector<32x128xf32>
    %32 = vector.broadcast %10 : vector<1x128xf32> to vector<32x128xf32>
    %33 = arith.addf %31, %32 : vector<32x128xf32>
    %cst_21 = arith.constant dense<0.000000e+00> : vector<32xf32>
    %34 = vector.multi_reduction <add>, %0, %cst_21 [1] : vector<32x128xf32> to vector<32xf32>
    %35 = vector.shape_cast %34 : vector<32xf32> to vector<32x1xf32>
    %cst_22 = arith.constant 3.125000e-02 : f32
    %36 = vector.broadcast %cst_22 : f32 to vector<32x1xf32>
    %37 = arith.mulf %35, %36 : vector<32x1xf32>
    %38 = vector.broadcast %37 : vector<32x1xf32> to vector<32x128xf32>
    %39 = arith.subf %0, %38 : vector<32x128xf32>
    %40 = vector.broadcast %19 : vector<1x128xf32> to vector<32x128xf32>
    %41 = arith.mulf %39, %40 : vector<32x128xf32>
    %42 = arith.mulf %41, %41 : vector<32x128xf32>
    %cst_23 = arith.constant dense<0.000000e+00> : vector<32xf32>
    %43 = vector.multi_reduction <add>, %42, %cst_23 [1] : vector<32x128xf32> to vector<32xf32>
    %44 = vector.shape_cast %43 : vector<32xf32> to vector<32x1xf32>
    %cst_24 = arith.constant 3.125000e-02 : f32
    %45 = vector.broadcast %cst_24 : f32 to vector<32x1xf32>
    %46 = arith.mulf %44, %45 : vector<32x1xf32>
    %cst_25 = arith.constant 9.99999974E-6 : f32
    %47 = vector.broadcast %cst_25 : f32 to vector<32x1xf32>
    %48 = arith.addf %46, %47 : vector<32x1xf32>
    %49 = math.rsqrt %48 : vector<32x1xf32>
    %50 = vector.broadcast %49 : vector<32x1xf32> to vector<32x128xf32>
    %51 = arith.mulf %41, %50 : vector<32x128xf32>
    %52 = vector.broadcast %11 : vector<1x128xf32> to vector<32x128xf32>
    %53 = arith.mulf %51, %52 : vector<32x128xf32>
    %54 = vector.broadcast %12 : vector<1x128xf32> to vector<32x128xf32>
    %55 = arith.addf %53, %54 : vector<32x128xf32>
    %56 = arith.addf %55, %33 : vector<32x128xf32>
    %57 = vector.extract_strided_slice %56 {offsets = [0, 0], sizes = [32, 32], strides = [1, 1]} : vector<32x128xf32> to vector<32x32xf32>
    %cst_26 = arith.constant dense<0.000000e+00> : vector<32x128xf32>
    %58 = tpu.matmul %57, %4, %cst_26 {dimension_numbers = #tpu.dot_dimension_numbers<[1], [0], [0], [1], [0, 0, 1, 1], [], []>} : vector<32x32xf32>, vector<32x128xf32>, vector<32x128xf32> -> vector<32x128xf32>
    %59 = vector.broadcast %13 : vector<1x128xf32> to vector<32x128xf32>
    %60 = arith.addf %58, %59 : vector<32x128xf32>
    %61 = vector.extract_strided_slice %60 {offsets = [0, 0], sizes = [32, 32], strides = [1, 1]} : vector<32x128xf32> to vector<32x32xf32>
    %62 = vector.extract_strided_slice %60 {offsets = [0, 64], sizes = [32, 32], strides = [1, 1]} : vector<32x128xf32> to vector<32x32xf32>
    %63 = tpu.transpose %60, [1, 0] : vector<32x128xf32> -> vector<128x32xf32>
    %64 = vector.extract_strided_slice %63 {offsets = [32, 0], sizes = [32, 32], strides = [1, 1]} : vector<128x32xf32> to vector<32x32xf32>
    %cst_27 = arith.constant dense<0.000000e+00> : vector<32x256xf32>
    %65 = tpu.matmul %64, %22, %cst_27 {dimension_numbers = #tpu.dot_dimension_numbers<[1], [0], [0], [1], [0, 0, 1, 1], [], []>} : vector<32x32xf32>, vector<32x256xf32>, vector<32x256xf32> -> vector<32x256xf32>
    %66 = arith.mulf %65, %20 : vector<32x256xf32>
    %cst_28 = arith.constant dense<0.000000e+00> : vector<32x256xf32>
    %67 = tpu.matmul %61, %66, %cst_28 {dimension_numbers = #tpu.dot_dimension_numbers<[1], [0], [0], [1], [0, 0, 1, 1], [], []>} : vector<32x32xf32>, vector<32x256xf32>, vector<32x256xf32> -> vector<32x256xf32>
    %68 = arith.addf %67, %21 : vector<32x256xf32>
    %cst_29 = arith.constant dense<0xFF800000> : vector<32xf32>
    %69 = vector.multi_reduction <maximumf>, %68, %cst_29 [1] : vector<32x256xf32> to vector<32xf32>
    %70 = vector.shape_cast %69 : vector<32xf32> to vector<32x1xf32>
    %71 = vector.broadcast %70 : vector<32x1xf32> to vector<32x256xf32>
    %72 = arith.subf %68, %71 : vector<32x256xf32>
    %73 = math.exp %72 : vector<32x256xf32>
    %cst_30 = arith.constant dense<0.000000e+00> : vector<256x32xf32>
    %74 = tpu.matmul %24, %62, %cst_30 {dimension_numbers = #tpu.dot_dimension_numbers<[1], [0], [0], [1], [0, 0, 1, 1], [], []>} : vector<256x32xf32>, vector<32x32xf32>, vector<256x32xf32> -> vector<256x32xf32>
    %75 = arith.mulf %74, %23 : vector<256x32xf32>
    %cst_31 = arith.constant dense<0.000000e+00> : vector<32x32xf32>
    %76 = tpu.matmul %73, %75, %cst_31 {dimension_numbers = #tpu.dot_dimension_numbers<[1], [0], [0], [1], [0, 0, 1, 1], [], []>} : vector<32x256xf32>, vector<256x32xf32>, vector<32x32xf32> -> vector<32x32xf32>
    %cst_32 = arith.constant dense<0.000000e+00> : vector<32x32xf32>
    %77 = tpu.matmul %73, %23, %cst_32 {dimension_numbers = #tpu.dot_dimension_numbers<[1], [0], [0], [1], [0, 0, 1, 1], [], []>} : vector<32x256xf32>, vector<256x32xf32>, vector<32x32xf32> -> vector<32x32xf32>
    %78 = tpu.reciprocal %77 {approx = true} : vector<32x32xf32> -> vector<32x32xf32>
    %79 = arith.mulf %76, %78 : vector<32x32xf32>
    %cst_33 = arith.constant dense<0.000000e+00> : vector<32x128xf32>
    %80 = tpu.matmul %79, %5, %cst_33 {dimension_numbers = #tpu.dot_dimension_numbers<[1], [0], [0], [1], [0, 0, 1, 1], [], []>} : vector<32x32xf32>, vector<32x128xf32>, vector<32x128xf32> -> vector<32x128xf32>
    %81 = vector.broadcast %14 : vector<1x128xf32> to vector<32x128xf32>
    %82 = arith.addf %80, %81 : vector<32x128xf32>
    %83 = arith.addf %0, %82 : vector<32x128xf32>
    %cst_34 = arith.constant dense<0.000000e+00> : vector<32xf32>
    %84 = vector.multi_reduction <add>, %83, %cst_34 [1] : vector<32x128xf32> to vector<32xf32>
    %85 = vector.shape_cast %84 : vector<32xf32> to vector<32x1xf32>
    %cst_35 = arith.constant 3.125000e-02 : f32
    %86 = vector.broadcast %cst_35 : f32 to vector<32x1xf32>
    %87 = arith.mulf %85, %86 : vector<32x1xf32>
    %88 = vector.broadcast %87 : vector<32x1xf32> to vector<32x128xf32>
    %89 = arith.subf %83, %88 : vector<32x128xf32>
    %90 = vector.broadcast %19 : vector<1x128xf32> to vector<32x128xf32>
    %91 = arith.mulf %89, %90 : vector<32x128xf32>
    %92 = arith.mulf %91, %91 : vector<32x128xf32>
    %cst_36 = arith.constant dense<0.000000e+00> : vector<32xf32>
    %93 = vector.multi_reduction <add>, %92, %cst_36 [1] : vector<32x128xf32> to vector<32xf32>
    %94 = vector.shape_cast %93 : vector<32xf32> to vector<32x1xf32>
    %cst_37 = arith.constant 3.125000e-02 : f32
    %95 = vector.broadcast %cst_37 : f32 to vector<32x1xf32>
    %96 = arith.mulf %94, %95 : vector<32x1xf32>
    %cst_38 = arith.constant 9.99999974E-6 : f32
    %97 = vector.broadcast %cst_38 : f32 to vector<32x1xf32>
    %98 = arith.addf %96, %97 : vector<32x1xf32>
    %99 = math.rsqrt %98 : vector<32x1xf32>
    %100 = vector.broadcast %99 : vector<32x1xf32> to vector<32x128xf32>
    %101 = arith.mulf %91, %100 : vector<32x128xf32>
    %102 = vector.broadcast %15 : vector<1x128xf32> to vector<32x128xf32>
    %103 = arith.mulf %101, %102 : vector<32x128xf32>
    %104 = vector.broadcast %16 : vector<1x128xf32> to vector<32x128xf32>
    %105 = arith.addf %103, %104 : vector<32x128xf32>
    %106 = vector.extract_strided_slice %105 {offsets = [0, 0], sizes = [32, 32], strides = [1, 1]} : vector<32x128xf32> to vector<32x32xf32>
    %cst_39 = arith.constant dense<0.000000e+00> : vector<32x128xf32>
    %107 = tpu.matmul %106, %6, %cst_39 {dimension_numbers = #tpu.dot_dimension_numbers<[1], [0], [0], [1], [0, 0, 1, 1], [], []>} : vector<32x32xf32>, vector<32x128xf32>, vector<32x128xf32> -> vector<32x128xf32>
    %108 = vector.broadcast %17 : vector<1x128xf32> to vector<32x128xf32>
    %109 = arith.addf %107, %108 : vector<32x128xf32>
    %cst_40 = arith.constant 0.000000e+00 : f32
    %110 = vector.broadcast %cst_40 : f32 to vector<32x128xf32>
    %111 = arith.maximumf %109, %110 : vector<32x128xf32>
    %cst_41 = arith.constant dense<0.000000e+00> : vector<32x128xf32>
    %112 = tpu.matmul %111, %7, %cst_41 {dimension_numbers = #tpu.dot_dimension_numbers<[1], [0], [0], [1], [0, 0, 1, 1], [], []>} : vector<32x128xf32>, vector<128x128xf32>, vector<32x128xf32> -> vector<32x128xf32>
    %113 = vector.broadcast %18 : vector<1x128xf32> to vector<32x128xf32>
    %114 = arith.addf %112, %113 : vector<32x128xf32>
    %115 = arith.addf %83, %114 : vector<32x128xf32>
    %c0_42 = arith.constant 0 : index
    %c0_43 = arith.constant 0 : index
    %116 = vector.load %arg6[%c0_42, %c0_43] : memref<32x128xf32, #tpu.memory_space<vmem>>, vector<32x128xf32>
    tpu.vector_store %arg6[%c0_42, %c0_43], %115 {strides = array<i32>} : memref<32x128xf32, #tpu.memory_space<vmem>>, vector<32x128xf32>,
    return
  }
}

</mosaic_0001>

<llo_original>
// kernel: tpu_custom_call.1
$region0: #{tpu_custom_call.1}
  #allocation0 [shape = 'u32[]', space=smem, size = 0x4, offset = 0x4, fixed_abs, tag = 'smem constant byte address 0x4 - core index']
  #allocation1 [shape = 'u32[144,128]{1,0:T(1,128)}', space=vmem, size = 0x12000, scoped, tag = 'internal scratch']
  %s0 = inlined_call_operand.vmem [shape: f32[32,128], index: 0, kind: input, shape index: {}]
  %s1 = inlined_call_operand.vmem [shape: f32[32,8], index: 1, kind: input, shape index: {}]
  %s2 = inlined_call_operand.vmem [shape: f32[264,128], index: 2, kind: input, shape index: {}]
  %s3 = inlined_call_operand.vmem [shape: f32[16,128], index: 3, kind: input, shape index: {}]
  %s4 = inlined_call_operand.vmem [shape: f32[96,256], index: 4, kind: input, shape index: {}]
  %s5 = inlined_call_operand.vmem [shape: f32[512,32], index: 5, kind: input, shape index: {}]
  %s6 = inlined_call_operand.hbm [shape: f32[32,128], index: 6, kind: output, shape index: {}]
  %s7 = sld [smem:[#allocation0]]
  $region34: #{tpu_custom_call.1} parent=0
    _
  %s9 = ssub.s32 1, %s7
  %s10 = scalar_select 0, %s9, %s7
  $region1: #{tpu_custom_call.1} parent=0
    #allocation2 [shape = 'u8[16384]{0}', space=vmem, size = 0x4000, scoped, tag = 'output window, operand 0, single buffered']
    #allocation3 [shape = 's32[1]{0}', space=sflag, size = 0x4, scoped, tag = 'scoped memory for tpu_custom_call.1']
    %11 = vsyncpa [#allocation3], 0
    // Predicated region
    $region2: #{tpu_custom_call.1} parent=1 // pred_check
      _
    $region3: #{tpu_custom_call.1} parent=1 // pred_check_branch
      %13 = sbr.rel (0) target = $region5
    $region4: #{tpu_custom_call.1} parent=1 // pred_region
      _
    $region5: #{tpu_custom_call.1} parent=1 // pred_fallthru
      _
    // Predicated region
    $region6: #{tpu_custom_call.1} parent=1 // pred_check
      _
    $region7: #{tpu_custom_call.1} parent=1 // pred_check_branch
      %15 = sbr.rel (0) target = $region9
    $region8: #{tpu_custom_call.1} parent=1 // pred_region
      _
    $region9: #{tpu_custom_call.1} parent=1 // pred_fallthru
      _
    // Predicated region
    $region10: #{tpu_custom_call.1} parent=1 // pred_check
      _
    $region11: #{tpu_custom_call.1} parent=1 // pred_check_branch
      %17 = sbr.rel (0) target = $region13
    $region12: #{tpu_custom_call.1} parent=1 // pred_region
      _
    $region13: #{tpu_custom_call.1} parent=1 // pred_fallthru
      _
    // Predicated region
    $region14: #{tpu_custom_call.1} parent=1 // pred_check
      _
    $region15: #{tpu_custom_call.1} parent=1 // pred_check_branch
      %19 = sbr.rel (0) target = $region17
    $region16: #{tpu_custom_call.1} parent=1 // pred_region
      _
    $region17: #{tpu_custom_call.1} parent=1 // pred_fallthru
      _
    // Predicated region
    $region18: #{tpu_custom_call.1} parent=1 // pred_check
      _
    $region19: #{tpu_custom_call.1} parent=1 // pred_check_branch
      %21 = sbr.rel (0) target = $region21
    $region20: #{tpu_custom_call.1} parent=1 // pred_region
      _
    $region21: #{tpu_custom_call.1} parent=1 // pred_fallthru
      _
    // Predicated region
    $region22: #{tpu_custom_call.1} parent=1 // pred_check
      _
    $region23: #{tpu_custom_call.1} parent=1 // pred_check_branch
      %23 = sbr.rel (0) target = $region25
    $region24: #{tpu_custom_call.1} parent=1 // pred_region
      _
    $region25: #{tpu_custom_call.1} parent=1 // pred_fallthru
      _
    %v24 = vld [vmem:[%s0] sm:$0xff]
    %v25 = vld [vmem:[%s0 + $0x8] sm:$0xff]
    %v26 = vld [vmem:[%s0 + $0x10] sm:$0xff]
    %v27 = vld [vmem:[%s0 + $0x18] sm:$0xff]
    %v28 = vld [vmem:[%s1] sm:$0xff]
    %v29 = vld [vmem:[%s1 + $0x8] sm:$0xff]
    %v30 = vld [vmem:[%s1 + $0x10] sm:$0xff]
    %v31 = vld [vmem:[%s1 + $0x18] sm:$0xff]
    %v32 = vld [vmem:[%s2] sm:$0xff]
    %v33 = vld [vmem:[%s2 + $0x8] sm:$0xff]
    %v34 = vld [vmem:[%s2 + $0x10] sm:$0xff]
    %v35 = vld [vmem:[%s2 + $0x18] sm:$0xff]
    %v36 = vld [vmem:[%s2 + $0x20] sm:$0xff]
    %v37 = vld [vmem:[%s2 + $0x28] sm:$0xff]
    %v38 = vld [vmem:[%s2 + $0x30] sm:$0xff]
    %v39 = vld [vmem:[%s2 + $0x38] sm:$0xff]
    %v40 = vld [vmem:[%s2 + $0x40] sm:$0xff]
    %v41 = vld [vmem:[%s2 + $0x48] sm:$0xff]
    %v42 = vld [vmem:[%s2 + $0x50] sm:$0xff]
    %v43 = vld [vmem:[%s2 + $0x58] sm:$0xff]
    %v44 = vld [vmem:[%s2 + $0x60] sm:$0xff]
    %v45 = vld [vmem:[%s2 + $0x68] sm:$0xff]
    %v46 = vld [vmem:[%s2 + $0x70] sm:$0xff]
    %v47 = vld [vmem:[%s2 + $0x78] sm:$0xff]
    %v48 = vld [vmem:[%s2 + $0x80] sm:$0xff]
    %v49 = vld [vmem:[%s2 + $0x88] sm:$0xff]
    %v50 = vld [vmem:[%s2 + $0x90] sm:$0xff]
    %v51 = vld [vmem:[%s2 + $0x98] sm:$0xff]
    %v52 = vld [vmem:[%s2 + $0xa0] sm:$0xff]
    %v53 = vld [vmem:[%s2 + $0xa8] sm:$0xff]
    %v54 = vld [vmem:[%s2 + $0xb0] sm:$0xff]
    %v55 = vld [vmem:[%s2 + $0xb8] sm:$0xff]
    %v56 = vld [vmem:[%s2 + $0xc0] sm:$0xff]
    %v57 = vld [vmem:[%s2 + $0xc8] sm:$0xff]
    %v58 = vld [vmem:[%s2 + $0xd0] sm:$0xff]
    %v59 = vld [vmem:[%s2 + $0xd8] sm:$0xff]
    %v60 = vld [vmem:[%s2 + $0xe0] sm:$0xff]
    %v61 = vld [vmem:[%s2 + $0xe8] sm:$0xff]
    %v62 = vld [vmem:[%s2 + $0xf0] sm:$0xff]
    %v63 = vld [vmem:[%s2 + $0xf8] sm:$0xff]
    %v64 = vld [vmem:[%s2 + $0x100] sm:$0xff]
    %v65 = vld [vmem:[%s3] sm:$0xff]
    %v66 = vld [vmem:[%s3 + $0x8] sm:$0xff]
    %v67 = vld [vmem:[%s4] sm:$0xff]
    %v68 = vld [vmem:[%s4 + $0x8] sm:$0xff]
    %v69 = vld [vmem:[%s4 + $0x10] sm:$0xff]
    %v70 = vld [vmem:[%s4 + $0x18] sm:$0xff]
    %v71 = vld [vmem:[%s4 + $0x20] sm:$0xff]
    %v72 = vld [vmem:[%s4 + $0x28] sm:$0xff]
    %v73 = vld [vmem:[%s4 + $0x30] sm:$0xff]
    %v74 = vld [vmem:[%s4 + $0x38] sm:$0xff]
    %v75 = vld [vmem:[%s4 + $0x40] sm:$0xff]
    %v76 = vld [vmem:[%s4 + $0x48] sm:$0xff]
    %v77 = vld [vmem:[%s4 + $0x50] sm:$0xff]
    %v78 = vld [vmem:[%s4 + $0x58] sm:$0xff]
    %v79 = vld [vmem:[%s4 + $0x60] sm:$0xff]
    %v80 = vld [vmem:[%s4 + $0x68] sm:$0xff]
    %v81 = vld [vmem:[%s4 + $0x70] sm:$0xff]
    %v82 = vld [vmem:[%s4 + $0x78] sm:$0xff]
    %v83 = vld [vmem:[%s4 + $0x80] sm:$0xff]
    %v84 = vld [vmem:[%s4 + $0x88] sm:$0xff]
    %v85 = vld [vmem:[%s4 + $0x90] sm:$0xff]
    %v86 = vld [vmem:[%s4 + $0x98] sm:$0xff]
    %v87 = vld [vmem:[%s4 + $0xa0] sm:$0xff]
    %v88 = vld [vmem:[%s4 + $0xa8] sm:$0xff]
    %v89 = vld [vmem:[%s4 + $0xb0] sm:$0xff]
    %v90 = vld [vmem:[%s4 + $0xb8] sm:$0xff]
    %v91 = vld [vmem:[%s5] sm:$0xff]
    %v92 = vld [vmem:[%s5 + $0x8] sm:$0xff]
    %v93 = vld [vmem:[%s5 + $0x10] sm:$0xff]
    %v94 = vld [vmem:[%s5 + $0x18] sm:$0xff]
    %v95 = vld [vmem:[%s5 + $0x20] sm:$0xff]
    %v96 = vld [vmem:[%s5 + $0x28] sm:$0xff]
    %v97 = vld [vmem:[%s5 + $0x30] sm:$0xff]
    %v98 = vld [vmem:[%s5 + $0x38] sm:$0xff]
    %v99 = vld [vmem:[%s5 + $0x40] sm:$0xff]
    %v100 = vld [vmem:[%s5 + $0x48] sm:$0xff]
    %v101 = vld [vmem:[%s5 + $0x50] sm:$0xff]
    %v102 = vld [vmem:[%s5 + $0x58] sm:$0xff]
    %v103 = vld [vmem:[%s5 + $0x60] sm:$0xff]
    %v104 = vld [vmem:[%s5 + $0x68] sm:$0xff]
    %v105 = vld [vmem:[%s5 + $0x70] sm:$0xff]
    %v106 = vld [vmem:[%s5 + $0x78] sm:$0xff]
    %v107 = vld [vmem:[%s5 + $0x80] sm:$0xff]
    %v108 = vld [vmem:[%s5 + $0x88] sm:$0xff]
    %v109 = vld [vmem:[%s5 + $0x90] sm:$0xff]
    %v110 = vld [vmem:[%s5 + $0x98] sm:$0xff]
    %v111 = vld [vmem:[%s5 + $0xa0] sm:$0xff]
    %v112 = vld [vmem:[%s5 + $0xa8] sm:$0xff]
    %v113 = vld [vmem:[%s5 + $0xb0] sm:$0xff]
    %v114 = vld [vmem:[%s5 + $0xb8] sm:$0xff]
    %v115 = vld [vmem:[%s5 + $0xc0] sm:$0xff]
    %v116 = vld [vmem:[%s5 + $0xc8] sm:$0xff]
    %v117 = vld [vmem:[%s5 + $0xd0] sm:$0xff]
    %v118 = vld [vmem:[%s5 + $0xd8] sm:$0xff]
    %v119 = vld [vmem:[%s5 + $0xe0] sm:$0xff]
    %v120 = vld [vmem:[%s5 + $0xe8] sm:$0xff]
    %v121 = vld [vmem:[%s5 + $0xf0] sm:$0xff]
    %v122 = vld [vmem:[%s5 + $0xf8] sm:$0xff]
    %v123 = vld [vmem:[%s5 + $0x100] sm:$0xff]
    %v124 = vld [vmem:[%s5 + $0x108] sm:$0xff]
    %v125 = vld [vmem:[%s5 + $0x110] sm:$0xff]
    %v126 = vld [vmem:[%s5 + $0x118] sm:$0xff]
    %v127 = vld [vmem:[%s5 + $0x120] sm:$0xff]
    %v128 = vld [vmem:[%s5 + $0x128] sm:$0xff]
    %v129 = vld [vmem:[%s5 + $0x130] sm:$0xff]
    %v130 = vld [vmem:[%s5 + $0x138] sm:$0xff]
    %v131 = vld [vmem:[%s5 + $0x140] sm:$0xff]
    %v132 = vld [vmem:[%s5 + $0x148] sm:$0xff]
    %v133 = vld [vmem:[%s5 + $0x150] sm:$0xff]
    %v134 = vld [vmem:[%s5 + $0x158] sm:$0xff]
    %v135 = vld [vmem:[%s5 + $0x160] sm:$0xff]
    %v136 = vld [vmem:[%s5 + $0x168] sm:$0xff]
    %v137 = vld [vmem:[%s5 + $0x170] sm:$0xff]
    %v138 = vld [vmem:[%s5 + $0x178] sm:$0xff]
    %v139 = vld [vmem:[%s5 + $0x180] sm:$0xff]
    %v140 = vld [vmem:[%s5 + $0x188] sm:$0xff]
    %v141 = vld [vmem:[%s5 + $0x190] sm:$0xff]
    %v142 = vld [vmem:[%s5 + $0x198] sm:$0xff]
    %v143 = vld [vmem:[%s5 + $0x1a0] sm:$0xff]
    %v144 = vld [vmem:[%s5 + $0x1a8] sm:$0xff]
    %v145 = vld [vmem:[%s5 + $0x1b0] sm:$0xff]
    %v146 = vld [vmem:[%s5 + $0x1b8] sm:$0xff]
    %v147 = vld [vmem:[%s5 + $0x1c0] sm:$0xff]
    %v148 = vld [vmem:[%s5 + $0x1c8] sm:$0xff]
    %v149 = vld [vmem:[%s5 + $0x1d0] sm:$0xff]
    %v150 = vld [vmem:[%s5 + $0x1d8] sm:$0xff]
    %v151 = vld [vmem:[%s5 + $0x1e0] sm:$0xff]
    %v152 = vld [vmem:[%s5 + $0x1e8] sm:$0xff]
    %v153 = vld [vmem:[%s5 + $0x1f0] sm:$0xff]
    %v154 = vld [vmem:[%s5 + $0x1f8] sm:$0xff]
    %v155 = vlaneseq
    %v156 = vshrl.u32 %v155, 7
    %v157 = vsub.s32 0, %v156
    %v158 = vrot.slane %v65, %v157
    %vm159 = vcmask 64512
    %v161 = vsel %vm159, %v28, 0
    %v164 = vsel %vm159, %v29, 0
    %v167 = vsel %vm159, %v30, 0
    %v170 = vsel %vm159, %v31, 0
    %172 = vmatprep.subr.mxu0 0.0
    %173 = vmatpush1.msra.mxu0 %v32
    %174 = vmatprep.subr.mxu0 0.0
    %175 = vmatpush1.msra.mxu0 0.0
    %176 = vmatprep.subr.mxu0 0.0
    %177 = vmatpush1.msra.mxu0 0.0
    %178 = vmatprep.subr.mxu0 0.0
    %179 = vmatpush1.msra.mxu0 0.0
    %180 = vmatprep.subr.mxu0 0.0
    %181 = vmatpush1.msra.mxu0 0.0
    %182 = vmatprep.subr.mxu0 0.0
    %183 = vmatpush1.msra.mxu0 0.0
    %184 = vmatprep.subr.mxu0 0.0
    %185 = vmatpush1.msra.mxu0 0.0
    %186 = vmatprep.subr.mxu0 0.0
    %187 = vmatpush1.msra.mxu0 0.0
    %188 = vmatprep.subr.mxu0 0.0
    %189 = vmatpush1.msra.mxu0 0.0
    %190 = vmatprep.subr.mxu0 0.0
    %191 = vmatpush1.msra.mxu0 0.0
    %192 = vmatprep.subr.mxu0 0.0
    %193 = vmatpush1.msra.mxu0 0.0
    %194 = vmatprep.subr.mxu0 0.0
    %195 = vmatpush1.msra.mxu0 0.0
    %196 = vmatprep.subr.mxu0 0.0
    %197 = vmatpush1.msra.mxu0 0.0
    %198 = vmatprep.subr.mxu0 0.0
    %199 = vmatpush1.msra.mxu0 0.0
    %200 = vmatprep.subr.mxu0 0.0
    %201 = vmatpush1.msra.mxu0 0.0
    %202 = vmatprep.subr.mxu0 0.0
    %203 = vmatpush1.msra.mxu0 0.0
    %204 = vmatprep.subr.mxu0 0.0
    %205 = vmatpush1.msra.mxu0 0.0
    %206 = vmatprep.subr.mxu0 0.0
    %207 = vmatpush1.msra.mxu0 0.0
    %208 = vmatprep.subr.mxu0 0.0
    %209 = vmatpush1.msra.mxu0 0.0
    %210 = vmatprep.subr.mxu0 0.0
    %211 = vmatpush1.msra.mxu0 0.0
    %212 = vmatprep.subr.mxu0 0.0
    %213 = vmatpush1.msra.mxu0 0.0
    %214 = vmatprep.subr.mxu0 0.0
    %215 = vmatpush1.msra.mxu0 0.0
    %216 = vmatprep.subr.mxu0 0.0
    %217 = vmatpush1.msra.mxu0 0.0
    %218 = vmatprep.subr.mxu0 0.0
    %219 = vmatpush1.msra.mxu0 0.0
    %220 = vmatprep.subr.mxu0 0.0
    %221 = vmatpush1.msra.mxu0 0.0
    %222 = vmatprep.subr.mxu0 0.0
    %223 = vmatpush1.msra.mxu0 0.0
    %224 = vmatprep.subr.mxu0 0.0
    %225 = vmatpush1.msra.mxu0 0.0
    %226 = vmatprep.subr.mxu0 0.0
    %227 = vmatpush1.msra.mxu0 0.0
    %228 = vmatprep.subr.mxu0 0.0
    %229 = vmatpush1.msra.mxu0 0.0
    %230 = vmatprep.subr.mxu0 0.0
    %231 = vmatpush1.msra.mxu0 0.0
    %232 = vmatprep.subr.mxu0 0.0
    %233 = vmatpush1.msra.mxu0 0.0
    %234 = vmatprep.subr.mxu0 0.0
    %235 = vmatpush1.msra.mxu0 0.0
    %236 = vmatprep.mubr.f32.mxu0 0.0
    %237 = vmatmul.mubr.f32.gmra.mrb[0].mxu0 %v161
    %v238 = vpop.f32.mrb[0].mxu0
    %v239 = vadd.f32 %v158, %v238
    %v240 = vpop.f32.mrb[0].mxu0
    %241 = vmatprep.mubr.f32.mxu0 0.0
    %242 = vmatmul.mubr.f32.gmra.mrb[0].mxu0 %v164
    %v243 = vpop.f32.mrb[0].mxu0
    %v244 = vadd.f32 %v158, %v243
    %v245 = vpop.f32.mrb[0].mxu0
    %246 = vmatprep.mubr.f32.mxu0 0.0
    %247 = vmatmul.mubr.f32.gmra.mrb[0].mxu0 %v167
    %v248 = vpop.f32.mrb[0].mxu0
    %v249 = vadd.f32 %v158, %v248
    %v250 = vpop.f32.mrb[0].mxu0
    %251 = vmatprep.mubr.f32.mxu0 0.0
    %252 = vmatmul.mubr.f32.gmra.mrb[0].mxu0 %v170
    %v253 = vpop.f32.mrb[0].mxu0
    %v254 = vadd.f32 %v158, %v253
    %v255 = vpop.f32.mrb[0].mxu0
    %256 = vdwg.mxu0
    %v257 = vmax.f32 %v239, 0.0
    %v258 = vmax.f32 %v244, 0.0
    %v259 = vmax.f32 %v249, 0.0
    %v260 = vmax.f32 %v254, 0.0
    %v261 = vlaneseq
    %v262 = vshrl.u32 %v261, 7
    %v263 = vsub.s32 1, %v262
    %v264 = vrot.slane %v65, %v263
    %vm265 = vcmask 261120
    %v267 = vsel %vm265, %v257, 0
    %v270 = vsel %vm265, %v258, 0
    %v273 = vsel %vm265, %v259, 0
    %v276 = vsel %vm265, %v260, 0
    %278 = vmatprep.subr.mxu0 0.0
    %279 = vmatpush1.msra.mxu0 %v33
    %280 = vmatprep.subr.mxu0 0.0
    %281 = vmatpush1.msra.mxu0 %v34
    %282 = vmatprep.subr.mxu0 0.0
    %283 = vmatpush1.msra.mxu0 %v35
    %284 = vmatprep.subr.mxu0 0.0
    %285 = vmatpush1.msra.mxu0 %v36
    %286 = vmatprep.subr.mxu0 0.0
    %287 = vmatpush1.msra.mxu0 0.0
    %288 = vmatprep.subr.mxu0 0.0
    %289 = vmatpush1.msra.mxu0 0.0
    %290 = vmatprep.subr.mxu0 0.0
    %291 = vmatpush1.msra.mxu0 0.0
    %292 = vmatprep.subr.mxu0 0.0
    %293 = vmatpush1.msra.mxu0 0.0
    %294 = vmatprep.subr.mxu0 0.0
    %295 = vmatpush1.msra.mxu0 0.0
    %296 = vmatprep.subr.mxu0 0.0
    %297 = vmatpush1.msra.mxu0 0.0
    %298 = vmatprep.subr.mxu0 0.0
    %299 = vmatpush1.msra.mxu0 0.0
    %300 = vmatprep.subr.mxu0 0.0
    %301 = vmatpush1.msra.mxu0 0.0
    %302 = vmatprep.subr.mxu0 0.0
    %303 = vmatpush1.msra.mxu0 0.0
    %304 = vmatprep.subr.mxu0 0.0
    %305 = vmatpush1.msra.mxu0 0.0
    %306 = vmatprep.subr.mxu0 0.0
    %307 = vmatpush1.msra.mxu0 0.0
    %308 = vmatprep.subr.mxu0 0.0
    %309 = vmatpush1.msra.mxu0 0.0
    %310 = vmatprep.subr.mxu0 0.0
    %311 = vmatpush1.msra.mxu0 0.0
    %312 = vmatprep.subr.mxu0 0.0
    %313 = vmatpush1.msra.mxu0 0.0
    %314 = vmatprep.subr.mxu0 0.0
    %315 = vmatpush1.msra.mxu0 0.0
    %316 = vmatprep.subr.mxu0 0.0
    %317 = vmatpush1.msra.mxu0 0.0
    %318 = vmatprep.subr.mxu0 0.0
    %319 = vmatpush1.msra.mxu0 0.0
    %320 = vmatprep.subr.mxu0 0.0
    %321 = vmatpush1.msra.mxu0 0.0
    %322 = vmatprep.subr.mxu0 0.0
    %323 = vmatpush1.msra.mxu0 0.0
    %324 = vmatprep.subr.mxu0 0.0
    %325 = vmatpush1.msra.mxu0 0.0
    %326 = vmatprep.subr.mxu0 0.0
    %327 = vmatpush1.msra.mxu0 0.0
    %328 = vmatprep.subr.mxu0 0.0
    %329 = vmatpush1.msra.mxu0 0.0
    %330 = vmatprep.subr.mxu0 0.0
    %331 = vmatpush1.msra.mxu0 0.0
    %332 = vmatprep.subr.mxu0 0.0
    %333 = vmatpush1.msra.mxu0 0.0
    %334 = vmatprep.subr.mxu0 0.0
    %335 = vmatpush1.msra.mxu0 0.0
    %336 = vmatprep.subr.mxu0 0.0
    %337 = vmatpush1.msra.mxu0 0.0
    %338 = vmatprep.subr.mxu0 0.0
    %339 = vmatpush1.msra.mxu0 0.0
    %340 = vmatprep.subr.mxu0 0.0
    %341 = vmatpush1.msra.mxu0 0.0
    %342 = vmatprep.mubr.f32.mxu0 0.0
    %343 = vmatmul.mubr.f32.gmra.mrb[0].mxu0 %v267
    %v344 = vpop.f32.mrb[0].mxu0
    %v345 = vadd.f32 %v264, %v344
    %v346 = vpop.f32.mrb[0].mxu0
    %347 = vmatprep.mubr.f32.mxu0 0.0
    %348 = vmatmul.mubr.f32.gmra.mrb[0].mxu0 %v270
    %v349 = vpop.f32.mrb[0].mxu0
    %v350 = vadd.f32 %v264, %v349
    %v351 = vpop.f32.mrb[0].mxu0
    %352 = vmatprep.mubr.f32.mxu0 0.0
    %353 = vmatmul.mubr.f32.gmra.mrb[0].mxu0 %v273
    %v354 = vpop.f32.mrb[0].mxu0
    %v355 = vadd.f32 %v264, %v354
    %v356 = vpop.f32.mrb[0].mxu0
    %357 = vmatprep.mubr.f32.mxu0 0.0
    %358 = vmatmul.mubr.f32.gmra.mrb[0].mxu0 %v276
    %v359 = vpop.f32.mrb[0].mxu0
    %v360 = vadd.f32 %v264, %v359
    %v361 = vpop.f32.mrb[0].mxu0
    %362 = vdwg.mxu0
    %363 = vadd.xlane.f32.xlu0 %v24
    %v364 = vpop.xlane.xlu0 %363
    %365 = vadd.xlane.f32.xlu0 %v25
    %v366 = vpop.xlane.xlu0 %365
    %367 = vadd.xlane.f32.xlu0 %v26
    %v368 = vpop.xlane.xlu0 %367
    %369 = vadd.xlane.f32.xlu0 %v27
    %v370 = vpop.xlane.xlu0 %369
    %v371 = vmul.f32 %v364, 0.03125
    %v372 = vmul.f32 %v366, 0.03125
    %v373 = vmul.f32 %v368, 0.03125
    %v374 = vmul.f32 %v370, 0.03125
    %v375 = vsub.f32 %v24, %v371
    %v376 = vsub.f32 %v25, %v372
    %v377 = vsub.f32 %v26, %v373
    %v378 = vsub.f32 %v27, %v374
    %v379 = vlaneseq
    %v380 = vshrl.u32 %v379, 7
    %v381 = vsub.s32 2, %v380
    %v382 = vrot.slane %v66, %v381
    %v383 = vmul.f32 %v375, %v382
    %v384 = vmul.f32 %v376, %v382
    %v385 = vmul.f32 %v377, %v382
    %v386 = vmul.f32 %v378, %v382
    %v387 = vmul.f32 %v383, %v383
    %v388 = vmul.f32 %v384, %v384
    %v389 = vmul.f32 %v385, %v385
    %v390 = vmul.f32 %v386, %v386
    %391 = vadd.xlane.f32.xlu0 %v387
    %v392 = vpop.xlane.xlu0 %391
    %393 = vadd.xlane.f32.xlu0 %v388
    %v394 = vpop.xlane.xlu0 %393
    %395 = vadd.xlane.f32.xlu0 %v389
    %v396 = vpop.xlane.xlu0 %395
    %397 = vadd.xlane.f32.xlu0 %v390
    %v398 = vpop.xlane.xlu0 %397
    %v399 = vmul.f32 %v392, 0.03125
    %v400 = vmul.f32 %v394, 0.03125
    %v401 = vmul.f32 %v396, 0.03125
    %v402 = vmul.f32 %v398, 0.03125
    %v403 = vadd.f32 %v399, 1e-05
    %v404 = vadd.f32 %v400, 1e-05
    %v405 = vadd.f32 %v401, 1e-05
    %v406 = vadd.f32 %v402, 1e-05
    %v407 = vrsqrt.pop %v403
    %v408 = vrsqrt.pop %v404
    %v409 = vrsqrt.pop %v405
    %v410 = vrsqrt.pop %v406
    %v411 = vmul.f32 %v383, %v407
    %v412 = vmul.f32 %v384, %v408
    %v413 = vmul.f32 %v385, %v409
    %v414 = vmul.f32 %v386, %v410
    %v415 = vlaneseq
    %v416 = vshrl.u32 %v415, 7
    %v417 = vsub.s32 2, %v416
    %v418 = vrot.slane %v65, %v417
    %v419 = vmul.f32 %v411, %v418
    %v420 = vmul.f32 %v412, %v418
    %v421 = vmul.f32 %v413, %v418
    %v422 = vmul.f32 %v414, %v418
    %v423 = vlaneseq
    %v424 = vshrl.u32 %v423, 7
    %v425 = vsub.s32 3, %v424
    %v426 = vrot.slane %v65, %v425
    %v427 = vadd.f32 %v419, %v426
    %v428 = vadd.f32 %v420, %v426
    %v429 = vadd.f32 %v421, %v426
    %v430 = vadd.f32 %v422, %v426
    %v431 = vadd.f32 %v427, %v345
    %v432 = vadd.f32 %v428, %v350
    %v433 = vadd.f32 %v429, %v355
    %v434 = vadd.f32 %v430, %v360
    %v435 = vlaneseq
    %v436 = vshrl.u32 %v435, 7
    %v437 = vsub.s32 4, %v436
    %v438 = vrot.slane %v65, %v437
    %v440 = vsel %vm265, %v431, 0
    %v443 = vsel %vm265, %v432, 0
    %v446 = vsel %vm265, %v433, 0
    %v449 = vsel %vm265, %v434, 0
    %451 = vmatprep.subr.mxu0 0.0
    %452 = vmatpush1.msra.mxu0 %v37
    %453 = vmatprep.subr.mxu0 0.0
    %454 = vmatpush1.msra.mxu0 %v38
    %455 = vmatprep.subr.mxu0 0.0
    %456 = vmatpush1.msra.mxu0 %v39
    %457 = vmatprep.subr.mxu0 0.0
    %458 = vmatpush1.msra.mxu0 %v40
    %459 = vmatprep.subr.mxu0 0.0
    %460 = vmatpush1.msra.mxu0 0.0
    %461 = vmatprep.subr.mxu0 0.0
    %462 = vmatpush1.msra.mxu0 0.0
    %463 = vmatprep.subr.mxu0 0.0
    %464 = vmatpush1.msra.mxu0 0.0
    %465 = vmatprep.subr.mxu0 0.0
    %466 = vmatpush1.msra.mxu0 0.0
    %467 = vmatprep.subr.mxu0 0.0
    %468 = vmatpush1.msra.mxu0 0.0
    %469 = vmatprep.subr.mxu0 0.0
    %470 = vmatpush1.msra.mxu0 0.0
    %471 = vmatprep.subr.mxu0 0.0
    %472 = vmatpush1.msra.mxu0 0.0
    %473 = vmatprep.subr.mxu0 0.0
    %474 = vmatpush1.msra.mxu0 0.0
    %475 = vmatprep.subr.mxu0 0.0
    %476 = vmatpush1.msra.mxu0 0.0
    %477 = vmatprep.subr.mxu0 0.0
    %478 = vmatpush1.msra.mxu0 0.0
    %479 = vmatprep.subr.mxu0 0.0
    %480 = vmatpush1.msra.mxu0 0.0
    %481 = vmatprep.subr.mxu0 0.0
    %482 = vmatpush1.msra.mxu0 0.0
    %483 = vmatprep.subr.mxu0 0.0
    %484 = vmatpush1.msra.mxu0 0.0
    %485 = vmatprep.subr.mxu0 0.0
    %486 = vmatpush1.msra.mxu0 0.0
    %487 = vmatprep.subr.mxu0 0.0
    %488 = vmatpush1.msra.mxu0 0.0
    %489 = vmatprep.subr.mxu0 0.0
    %490 = vmatpush1.msra.mxu0 0.0
    %491 = vmatprep.subr.mxu0 0.0
    %492 = vmatpush1.msra.mxu0 0.0
    %493 = vmatprep.subr.mxu0 0.0
    %494 = vmatpush1.msra.mxu0 0.0
    %495 = vmatprep.subr.mxu0 0.0
    %496 = vmatpush1.msra.mxu0 0.0
    %497 = vmatprep.subr.mxu0 0.0
    %498 = vmatpush1.msra.mxu0 0.0
    %499 = vmatprep.subr.mxu0 0.0
    %500 = vmatpush1.msra.mxu0 0.0
    %501 = vmatprep.subr.mxu0 0.0
    %502 = vmatpush1.msra.mxu0 0.0
    %503 = vmatprep.subr.mxu0 0.0
    %504 = vmatpush1.msra.mxu0 0.0
    %505 = vmatprep.subr.mxu0 0.0
    %506 = vmatpush1.msra.mxu0 0.0
    %507 = vmatprep.subr.mxu0 0.0
    %508 = vmatpush1.msra.mxu0 0.0
    %509 = vmatprep.subr.mxu0 0.0
    %510 = vmatpush1.msra.mxu0 0.0
    %511 = vmatprep.subr.mxu0 0.0
    %512 = vmatpush1.msra.mxu0 0.0
    %513 = vmatprep.subr.mxu0 0.0
    %514 = vmatpush1.msra.mxu0 0.0
    %515 = vmatprep.mubr.f32.mxu0 0.0
    %516 = vmatmul.mubr.f32.gmra.mrb[0].mxu0 %v440
    %v517 = vpop.f32.mrb[0].mxu0
    %v518 = vadd.f32 %v438, %v517
    %v519 = vpop.f32.mrb[0].mxu0
    %520 = vmatprep.mubr.f32.mxu0 0.0
    %521 = vmatmul.mubr.f32.gmra.mrb[0].mxu0 %v443
    %v522 = vpop.f32.mrb[0].mxu0
    %v523 = vadd.f32 %v438, %v522
    %v524 = vpop.f32.mrb[0].mxu0
    %525 = vmatprep.mubr.f32.mxu0 0.0
    %526 = vmatmul.mubr.f32.gmra.mrb[0].mxu0 %v446
    %v527 = vpop.f32.mrb[0].mxu0
    %v528 = vadd.f32 %v438, %v527
    %v529 = vpop.f32.mrb[0].mxu0
    %530 = vmatprep.mubr.f32.mxu0 0.0
    %531 = vmatmul.mubr.f32.gmra.mrb[0].mxu0 %v449
    %v532 = vpop.f32.mrb[0].mxu0
    %v533 = vadd.f32 %v438, %v532
    %v534 = vpop.f32.mrb[0].mxu0
    %535 = vdwg.mxu0
    %536 = vxpose.xlu0.b32.start [1/16] %v518, 128
    %537 = vxpose.xlu0.b32.cont [2/16] %v523, 128
    %538 = vxpose.xlu0.b32.cont [3/16] %v528, 128
    %539 = vxpose.xlu0.b32.cont [4/16] %v533, 128
    %540 = vxpose.xlu0.b32.cont [5/16] 0.0, 128
    %541 = vxpose.xlu0.b32.cont [6/16] 0.0, 128
    %542 = vxpose.xlu0.b32.cont [7/16] 0.0, 128
    %543 = vxpose.xlu0.b32.cont [8/16] 0.0, 128
    %544 = vxpose.xlu0.b32.cont [9/16] 0.0, 128
    %545 = vxpose.xlu0.b32.cont [10/16] 0.0, 128
    %546 = vxpose.xlu0.b32.cont [11/16] 0.0, 128
    %547 = vxpose.xlu0.b32.cont [12/16] 0.0, 128
    %548 = vxpose.xlu0.b32.cont [13/16] 0.0, 128
    %549 = vxpose.xlu0.b32.cont [14/16] 0.0, 128
    %550 = vxpose.xlu0.b32.cont [15/16] 0.0, 128
    %551 = vxpose.xlu0.b32.end [16/16] 0.0, 128
    %v552 = vpop.trf.xlu0
    %v553 = vpop.trf.xlu0
    %v554 = vpop.trf.xlu0
    %v555 = vpop.trf.xlu0
    %v556 = vpop.trf.xlu0
    %v557 = vpop.trf.xlu0
    %v558 = vpop.trf.xlu0
    %v559 = vpop.trf.xlu0
    %v560 = vpop.trf.xlu0
    %v561 = vpop.trf.xlu0
    %v562 = vpop.trf.xlu0
    %v563 = vpop.trf.xlu0
    %v564 = vpop.trf.xlu0
    %v565 = vpop.trf.xlu0
    %v566 = vpop.trf.xlu0
    %v567 = vpop.trf.xlu0
    %v569 = vsel %vm265, %v556, 0
    %v572 = vsel %vm265, %v557, 0
    %v575 = vsel %vm265, %v558, 0
    %v578 = vsel %vm265, %v559, 0
    %580 = vmatprep.subr.mxu0 %v84
    %581 = vmatpush1.msra.mxu0 %v83
    %582 = vmatprep.subr.mxu0 %v86
    %583 = vmatpush1.msra.mxu0 %v85
    %584 = vmatprep.subr.mxu0 %v88
    %585 = vmatpush1.msra.mxu0 %v87
    %586 = vmatprep.subr.mxu0 %v90
    %587 = vmatpush1.msra.mxu0 %v89
    %588 = vmatprep.subr.mxu0 0.0
    %589 = vmatpush1.msra.mxu0 0.0
    %590 = vmatprep.subr.mxu0 0.0
    %591 = vmatpush1.msra.mxu0 0.0
    %592 = vmatprep.subr.mxu0 0.0
    %593 = vmatpush1.msra.mxu0 0.0
    %594 = vmatprep.subr.mxu0 0.0
    %595 = vmatpush1.msra.mxu0 0.0
    %596 = vmatprep.subr.mxu0 0.0
    %597 = vmatpush1.msra.mxu0 0.0
    %598 = vmatprep.subr.mxu0 0.0
    %599 = vmatpush1.msra.mxu0 0.0
    %600 = vmatprep.subr.mxu0 0.0
    %601 = vmatpush1.msra.mxu0 0.0
    %602 = vmatprep.subr.mxu0 0.0
    %603 = vmatpush1.msra.mxu0 0.0
    %604 = vmatprep.subr.mxu0 0.0
    %605 = vmatpush1.msra.mxu0 0.0
    %606 = vmatprep.subr.mxu0 0.0
    %607 = vmatpush1.msra.mxu0 0.0
    %608 = vmatprep.subr.mxu0 0.0
    %609 = vmatpush1.msra.mxu0 0.0
    %610 = vmatprep.subr.mxu0 0.0
    %611 = vmatpush1.msra.mxu0 0.0
    %612 = vmatprep.subr.mxu0 0.0
    %613 = vmatpush1.msra.mxu0 0.0
    %614 = vmatprep.subr.mxu0 0.0
    %615 = vmatpush1.msra.mxu0 0.0
    %616 = vmatprep.subr.mxu0 0.0
    %617 = vmatpush1.msra.mxu0 0.0
    %618 = vmatprep.subr.mxu0 0.0
    %619 = vmatpush1.msra.mxu0 0.0
    %620 = vmatprep.subr.mxu0 0.0
    %621 = vmatpush1.msra.mxu0 0.0
    %622 = vmatprep.subr.mxu0 0.0
    %623 = vmatpush1.msra.mxu0 0.0
    %624 = vmatprep.subr.mxu0 0.0
    %625 = vmatpush1.msra.mxu0 0.0
    %626 = vmatprep.subr.mxu0 0.0
    %627 = vmatpush1.msra.mxu0 0.0
    %628 = vmatprep.subr.mxu0 0.0
    %629 = vmatpush1.msra.mxu0 0.0
    %630 = vmatprep.subr.mxu0 0.0
    %631 = vmatpush1.msra.mxu0 0.0
    %632 = vmatprep.subr.mxu0 0.0
    %633 = vmatpush1.msra.mxu0 0.0
    %634 = vmatprep.subr.mxu0 0.0
    %635 = vmatpush1.msra.mxu0 0.0
    %636 = vmatprep.subr.mxu0 0.0
    %637 = vmatpush1.msra.mxu0 0.0
    %638 = vmatprep.subr.mxu0 0.0
    %639 = vmatpush1.msra.mxu0 0.0
    %640 = vmatprep.subr.mxu0 0.0
    %641 = vmatpush1.msra.mxu0 0.0
    %642 = vmatprep.subr.mxu0 0.0
    %643 = vmatpush1.msra.mxu0 0.0
    %644 = vmatprep.mubr.f32.mxu0 0.0
    %645 = vmatmul.mubr.f32.gmra.mrb[0].mxu0 %v569
    %v646 = vpop.f32.mrb[0].mxu0
    %v647 = vadd.f32 0.0, %v646
    %v648 = vpop.f32.mrb[0].mxu0
    %v649 = vadd.f32 0.0, %v648
    %650 = vmatprep.mubr.f32.mxu0 0.0
    %651 = vmatmul.mubr.f32.gmra.mrb[0].mxu0 %v572
    %v652 = vpop.f32.mrb[0].mxu0
    %v653 = vadd.f32 0.0, %v652
    %v654 = vpop.f32.mrb[0].mxu0
    %v655 = vadd.f32 0.0, %v654
    %656 = vmatprep.mubr.f32.mxu0 0.0
    %657 = vmatmul.mubr.f32.gmra.mrb[0].mxu0 %v575
    %v658 = vpop.f32.mrb[0].mxu0
    %v659 = vadd.f32 0.0, %v658
    %v660 = vpop.f32.mrb[0].mxu0
    %v661 = vadd.f32 0.0, %v660
    %662 = vmatprep.mubr.f32.mxu0 0.0
    %663 = vmatmul.mubr.f32.gmra.mrb[0].mxu0 %v578
    %v664 = vpop.f32.mrb[0].mxu0
    %v665 = vadd.f32 0.0, %v664
    %v666 = vpop.f32.mrb[0].mxu0
    %v667 = vadd.f32 0.0, %v666
    %668 = vdwg.mxu0
    %v669 = vmul.f32 %v647, %v67
    %v670 = vmul.f32 %v649, %v68
    %v671 = vmul.f32 %v653, %v69
    %v672 = vmul.f32 %v655, %v70
    %v673 = vmul.f32 %v659, %v71
    %v674 = vmul.f32 %v661, %v72
    %v675 = vmul.f32 %v665, %v73
    %v676 = vmul.f32 %v667, %v74
    %v678 = vsel %vm265, %v518, 0
    %v681 = vsel %vm265, %v523, 0
    %v684 = vsel %vm265, %v528, 0
    %v687 = vsel %vm265, %v533, 0
    %689 = vmatprep.subr.mxu0 %v670
    %690 = vmatpush1.msra.mxu0 %v669
    %691 = vmatprep.subr.mxu0 %v672
    %692 = vmatpush1.msra.mxu0 %v671
    %693 = vmatprep.subr.mxu0 %v674
    %694 = vmatpush1.msra.mxu0 %v673
    %695 = vmatprep.subr.mxu0 %v676
    %696 = vmatpush1.msra.mxu0 %v675
    %697 = vmatprep.subr.mxu0 0.0
    %698 = vmatpush1.msra.mxu0 0.0
    %699 = vmatprep.subr.mxu0 0.0
    %700 = vmatpush1.msra.mxu0 0.0
    %701 = vmatprep.subr.mxu0 0.0
    %702 = vmatpush1.msra.mxu0 0.0
    %703 = vmatprep.subr.mxu0 0.0
    %704 = vmatpush1.msra.mxu0 0.0
    %705 = vmatprep.subr.mxu0 0.0
    %706 = vmatpush1.msra.mxu0 0.0
    %707 = vmatprep.subr.mxu0 0.0
    %708 = vmatpush1.msra.mxu0 0.0
    %709 = vmatprep.subr.mxu0 0.0
    %710 = vmatpush1.msra.mxu0 0.0
    %711 = vmatprep.subr.mxu0 0.0
    %712 = vmatpush1.msra.mxu0 0.0
    %713 = vmatprep.subr.mxu0 0.0
    %714 = vmatpush1.msra.mxu0 0.0
    %715 = vmatprep.subr.mxu0 0.0
    %716 = vmatpush1.msra.mxu0 0.0
    %717 = vmatprep.subr.mxu0 0.0
    %718 = vmatpush1.msra.mxu0 0.0
    %719 = vmatprep.subr.mxu0 0.0
    %720 = vmatpush1.msra.mxu0 0.0
    %721 = vmatprep.subr.mxu0 0.0
    %722 = vmatpush1.msra.mxu0 0.0
    %723 = vmatprep.subr.mxu0 0.0
    %724 = vmatpush1.msra.mxu0 0.0
    %725 = vmatprep.subr.mxu0 0.0
    %726 = vmatpush1.msra.mxu0 0.0
    %727 = vmatprep.subr.mxu0 0.0
    %728 = vmatpush1.msra.mxu0 0.0
    %729 = vmatprep.subr.mxu0 0.0
    %730 = vmatpush1.msra.mxu0 0.0
    %731 = vmatprep.subr.mxu0 0.0
    %732 = vmatpush1.msra.mxu0 0.0
    %733 = vmatprep.subr.mxu0 0.0
    %734 = vmatpush1.msra.mxu0 0.0
    %735 = vmatprep.subr.mxu0 0.0
    %736 = vmatpush1.msra.mxu0 0.0
    %737 = vmatprep.subr.mxu0 0.0
    %738 = vmatpush1.msra.mxu0 0.0
    %739 = vmatprep.subr.mxu0 0.0
    %740 = vmatpush1.msra.mxu0 0.0
    %741 = vmatprep.subr.mxu0 0.0
    %742 = vmatpush1.msra.mxu0 0.0
    %743 = vmatprep.subr.mxu0 0.0
    %744 = vmatpush1.msra.mxu0 0.0
    %745 = vmatprep.subr.mxu0 0.0
    %746 = vmatpush1.msra.mxu0 0.0
    %747 = vmatprep.subr.mxu0 0.0
    %748 = vmatpush1.msra.mxu0 0.0
    %749 = vmatprep.subr.mxu0 0.0
    %750 = vmatpush1.msra.mxu0 0.0
    %751 = vmatprep.subr.mxu0 0.0
    %752 = vmatpush1.msra.mxu0 0.0
    %753 = vmatprep.mubr.f32.mxu0 0.0
    %754 = vmatmul.mubr.f32.gmra.mrb[0].mxu0 %v678
    %v755 = vpop.f32.mrb[0].mxu0
    %v756 = vadd.f32 %v75, %v755
    %v757 = vpop.f32.mrb[0].mxu0
    %v758 = vadd.f32 %v76, %v757
    %759 = vmatprep.mubr.f32.mxu0 0.0
    %760 = vmatmul.mubr.f32.gmra.mrb[0].mxu0 %v681
    %v761 = vpop.f32.mrb[0].mxu0
    %v762 = vadd.f32 %v77, %v761
    %v763 = vpop.f32.mrb[0].mxu0
    %v764 = vadd.f32 %v78, %v763
    %765 = vmatprep.mubr.f32.mxu0 0.0
    %766 = vmatmul.mubr.f32.gmra.mrb[0].mxu0 %v684
    %v767 = vpop.f32.mrb[0].mxu0
    %v768 = vadd.f32 %v79, %v767
    %v769 = vpop.f32.mrb[0].mxu0
    %v770 = vadd.f32 %v80, %v769
    %771 = vmatprep.mubr.f32.mxu0 0.0
    %772 = vmatmul.mubr.f32.gmra.mrb[0].mxu0 %v687
    %v773 = vpop.f32.mrb[0].mxu0
    %v774 = vadd.f32 %v81, %v773
    %v775 = vpop.f32.mrb[0].mxu0
    %v776 = vadd.f32 %v82, %v775
    %777 = vdwg.mxu0
    %v778 = vmax.f32 %v756, %v758
    %779 = vmax.xlane.f32.xlu0 %v778
    %v780 = vpop.xlane.xlu0 %779
    %v781 = vmax.f32 %v762, %v764
    %782 = vmax.xlane.f32.xlu0 %v781
    %v783 = vpop.xlane.xlu0 %782
    %v784 = vmax.f32 %v768, %v770
    %785 = vmax.xlane.f32.xlu0 %v784
    %v786 = vpop.xlane.xlu0 %785
    %v787 = vmax.f32 %v774, %v776
    %788 = vmax.xlane.f32.xlu0 %v787
    %v789 = vpop.xlane.xlu0 %788
    %v790 = vsub.f32 %v756, %v780
    %v791 = vsub.f32 %v758, %v780
    %v792 = vsub.f32 %v762, %v783
    %v793 = vsub.f32 %v764, %v783
    %v794 = vsub.f32 %v768, %v786
    %v795 = vsub.f32 %v770, %v786
    %v796 = vsub.f32 %v774, %v789
    %v797 = vsub.f32 %v776, %v789
    %v798 = vmul.f32 %v790, 1.442695
    %v799 = vpow.pop %v798
    %v800 = vmul.f32 %v791, 1.442695
    %v801 = vpow.pop %v800
    %v802 = vmul.f32 %v792, 1.442695
    %v803 = vpow.pop %v802
    %v804 = vmul.f32 %v793, 1.442695
    %v805 = vpow.pop %v804
    %v806 = vmul.f32 %v794, 1.442695
    %v807 = vpow.pop %v806
    %v808 = vmul.f32 %v795, 1.442695
    %v809 = vpow.pop %v808
    %v810 = vmul.f32 %v796, 1.442695
    %v811 = vpow.pop %v810
    %v812 = vmul.f32 %v797, 1.442695
    %v813 = vpow.pop %v812
    %814 = vrot.lane.b32.xlu0 %v518, 64
    %v815 = vpop.permute.xlu0 %814
    %816 = vrot.lane.b32.xlu0 %v523, 64
    %v817 = vpop.permute.xlu0 %816
    %818 = vrot.lane.b32.xlu0 %v528, 64
    %v819 = vpop.permute.xlu0 %818
    %820 = vrot.lane.b32.xlu0 %v533, 64
    %v821 = vpop.permute.xlu0 %820
    %v827 = vsel %vm265, %v123, 0
    %v830 = vsel %vm265, %v124, 0
    %v833 = vsel %vm265, %v125, 0
    %v836 = vsel %vm265, %v126, 0
    %v839 = vsel %vm265, %v127, 0
    %v842 = vsel %vm265, %v128, 0
    %v845 = vsel %vm265, %v129, 0
    %v848 = vsel %vm265, %v130, 0
    %v851 = vsel %vm265, %v131, 0
    %v854 = vsel %vm265, %v132, 0
    %v857 = vsel %vm265, %v133, 0
    %v860 = vsel %vm265, %v134, 0
    %v863 = vsel %vm265, %v135, 0
    %v866 = vsel %vm265, %v136, 0
    %v869 = vsel %vm265, %v137, 0
    %v872 = vsel %vm265, %v138, 0
    %v875 = vsel %vm265, %v139, 0
    %v878 = vsel %vm265, %v140, 0
    %v881 = vsel %vm265, %v141, 0
    %v884 = vsel %vm265, %v142, 0
    %v887 = vsel %vm265, %v143, 0
    %v890 = vsel %vm265, %v144, 0
    %v893 = vsel %vm265, %v145, 0
    %v896 = vsel %vm265, %v146, 0
    %v899 = vsel %vm265, %v147, 0
    %v902 = vsel %vm265, %v148, 0
    %v905 = vsel %vm265, %v149, 0
    %v908 = vsel %vm265, %v150, 0
    %v911 = vsel %vm265, %v151, 0
    %v914 = vsel %vm265, %v152, 0
    %v917 = vsel %vm265, %v153, 0
    %v920 = vsel %vm265, %v154, 0
    %922 = vmatprep.subr.mxu0 0.0
    %923 = vmatpush1.msra.mxu0 %v815
    %924 = vmatprep.subr.mxu0 0.0
    %925 = vmatpush1.msra.mxu0 %v817
    %926 = vmatprep.subr.mxu0 0.0
    %927 = vmatpush1.msra.mxu0 %v819
    %928 = vmatprep.subr.mxu0 0.0
    %929 = vmatpush1.msra.mxu0 %v821
    %930 = vmatprep.subr.mxu0 0.0
    %931 = vmatpush1.msra.mxu0 0.0
    %932 = vmatprep.subr.mxu0 0.0
    %933 = vmatpush1.msra.mxu0 0.0
    %934 = vmatprep.subr.mxu0 0.0
    %935 = vmatpush1.msra.mxu0 0.0
    %936 = vmatprep.subr.mxu0 0.0
    %937 = vmatpush1.msra.mxu0 0.0
    %938 = vmatprep.subr.mxu0 0.0
    %939 = vmatpush1.msra.mxu0 0.0
    %940 = vmatprep.subr.mxu0 0.0
    %941 = vmatpush1.msra.mxu0 0.0
    %942 = vmatprep.subr.mxu0 0.0
    %943 = vmatpush1.msra.mxu0 0.0
    %944 = vmatprep.subr.mxu0 0.0
    %945 = vmatpush1.msra.mxu0 0.0
    %946 = vmatprep.subr.mxu0 0.0
    %947 = vmatpush1.msra.mxu0 0.0
    %948 = vmatprep.subr.mxu0 0.0
    %949 = vmatpush1.msra.mxu0 0.0
    %950 = vmatprep.subr.mxu0 0.0
    %951 = vmatpush1.msra.mxu0 0.0
    %952 = vmatprep.subr.mxu0 0.0
    %953 = vmatpush1.msra.mxu0 0.0
    %954 = vmatprep.subr.mxu0 0.0
    %955 = vmatpush1.msra.mxu0 0.0
    %956 = vmatprep.subr.mxu0 0.0
    %957 = vmatpush1.msra.mxu0 0.0
    %958 = vmatprep.subr.mxu0 0.0
    %959 = vmatpush1.msra.mxu0 0.0
    %960 = vmatprep.subr.mxu0 0.0
    %961 = vmatpush1.msra.mxu0 0.0
    %962 = vmatprep.subr.mxu0 0.0
    %963 = vmatpush1.msra.mxu0 0.0
    %964 = vmatprep.subr.mxu0 0.0
    %965 = vmatpush1.msra.mxu0 0.0
    %966 = vmatprep.subr.mxu0 0.0
    %967 = vmatpush1.msra.mxu0 0.0
    %968 = vmatprep.subr.mxu0 0.0
    %969 = vmatpush1.msra.mxu0 0.0
    %970 = vmatprep.subr.mxu0 0.0
    %971 = vmatpush1.msra.mxu0 0.0
    %972 = vmatprep.subr.mxu0 0.0
    %973 = vmatpush1.msra.mxu0 0.0
    %974 = vmatprep.subr.mxu0 0.0
    %975 = vmatpush1.msra.mxu0 0.0
    %976 = vmatprep.subr.mxu0 0.0
    %977 = vmatpush1.msra.mxu0 0.0
    %978 = vmatprep.subr.mxu0 0.0
    %979 = vmatpush1.msra.mxu0 0.0
    %980 = vmatprep.subr.mxu0 0.0
    %981 = vmatpush1.msra.mxu0 0.0
    %982 = vmatprep.subr.mxu0 0.0
    %983 = vmatpush1.msra.mxu0 0.0
    %984 = vmatprep.subr.mxu0 0.0
    %985 = vmatpush1.msra.mxu0 0.0
    %986 = vmatprep.mubr.f32.mxu0 0.0
    %987 = vmatmul.mubr.f32.gmra.mrb[0].mxu0 %v827
    %v988 = vpop.f32.mrb[0].mxu0
    %v989 = vadd.f32 0.0, %v988
    %v990 = vpop.f32.mrb[0].mxu0
    %991 = vmatprep.mubr.f32.mxu0 0.0
    %992 = vmatmul.mubr.f32.gmra.mrb[0].mxu0 %v830
    %v993 = vpop.f32.mrb[0].mxu0
    %v994 = vadd.f32 0.0, %v993
    %v995 = vpop.f32.mrb[0].mxu0
    %996 = vmatprep.mubr.f32.mxu0 0.0
    %997 = vmatmul.mubr.f32.gmra.mrb[0].mxu0 %v833
    %v998 = vpop.f32.mrb[0].mxu0
    %v999 = vadd.f32 0.0, %v998
    %v1000 = vpop.f32.mrb[0].mxu0
    %1001 = vmatprep.mubr.f32.mxu0 0.0
    %1002 = vmatmul.mubr.f32.gmra.mrb[0].mxu0 %v836
    %v1003 = vpop.f32.mrb[0].mxu0
    %v1004 = vadd.f32 0.0, %v1003
    %v1005 = vpop.f32.mrb[0].mxu0
    %1006 = vmatprep.mubr.f32.mxu0 0.0
    %1007 = vmatmul.mubr.f32.gmra.mrb[0].mxu0 %v839
    %v1008 = vpop.f32.mrb[0].mxu0
    %v1009 = vadd.f32 0.0, %v1008
    %v1010 = vpop.f32.mrb[0].mxu0
    %1011 = vmatprep.mubr.f32.mxu0 0.0
    %1012 = vmatmul.mubr.f32.gmra.mrb[0].mxu0 %v842
    %v1013 = vpop.f32.mrb[0].mxu0
    %v1014 = vadd.f32 0.0, %v1013
    %v1015 = vpop.f32.mrb[0].mxu0
    %1016 = vmatprep.mubr.f32.mxu0 0.0
    %1017 = vmatmul.mubr.f32.gmra.mrb[0].mxu0 %v845
    %v1018 = vpop.f32.mrb[0].mxu0
    %v1019 = vadd.f32 0.0, %v1018
    %v1020 = vpop.f32.mrb[0].mxu0
    %1021 = vmatprep.mubr.f32.mxu0 0.0
    %1022 = vmatmul.mubr.f32.gmra.mrb[0].mxu0 %v848
    %v1023 = vpop.f32.mrb[0].mxu0
    %v1024 = vadd.f32 0.0, %v1023
    %v1025 = vpop.f32.mrb[0].mxu0
    %1026 = vmatprep.mubr.f32.mxu0 0.0
    %1027 = vmatmul.mubr.f32.gmra.mrb[0].mxu0 %v851
    %v1028 = vpop.f32.mrb[0].mxu0
    %v1029 = vadd.f32 0.0, %v1028
    %v1030 = vpop.f32.mrb[0].mxu0
    %1031 = vmatprep.mubr.f32.mxu0 0.0
    %1032 = vmatmul.mubr.f32.gmra.mrb[0].mxu0 %v854
    %v1033 = vpop.f32.mrb[0].mxu0
    %v1034 = vadd.f32 0.0, %v1033
    %v1035 = vpop.f32.mrb[0].mxu0
    %1036 = vmatprep.mubr.f32.mxu0 0.0
    %1037 = vmatmul.mubr.f32.gmra.mrb[0].mxu0 %v857
    %v1038 = vpop.f32.mrb[0].mxu0
    %v1039 = vadd.f32 0.0, %v1038
    %v1040 = vpop.f32.mrb[0].mxu0
    %1041 = vmatprep.mubr.f32.mxu0 0.0
    %1042 = vmatmul.mubr.f32.gmra.mrb[0].mxu0 %v860
    %v1043 = vpop.f32.mrb[0].mxu0
    %v1044 = vadd.f32 0.0, %v1043
    %v1045 = vpop.f32.mrb[0].mxu0
    %1046 = vmatprep.mubr.f32.mxu0 0.0
    %1047 = vmatmul.mubr.f32.gmra.mrb[0].mxu0 %v863
    %v1048 = vpop.f32.mrb[0].mxu0
    %v1049 = vadd.f32 0.0, %v1048
    %v1050 = vpop.f32.mrb[0].mxu0
    %1051 = vmatprep.mubr.f32.mxu0 0.0
    %1052 = vmatmul.mubr.f32.gmra.mrb[0].mxu0 %v866
    %v1053 = vpop.f32.mrb[0].mxu0
    %v1054 = vadd.f32 0.0, %v1053
    %v1055 = vpop.f32.mrb[0].mxu0
    %1056 = vmatprep.mubr.f32.mxu0 0.0
    %1057 = vmatmul.mubr.f32.gmra.mrb[0].mxu0 %v869
    %v1058 = vpop.f32.mrb[0].mxu0
    %v1059 = vadd.f32 0.0, %v1058
    %v1060 = vpop.f32.mrb[0].mxu0
    %1061 = vmatprep.mubr.f32.mxu0 0.0
    %1062 = vmatmul.mubr.f32.gmra.mrb[0].mxu0 %v872
    %v1063 = vpop.f32.mrb[0].mxu0
    %v1064 = vadd.f32 0.0, %v1063
    %v1065 = vpop.f32.mrb[0].mxu0
    %1066 = vmatprep.mubr.f32.mxu0 0.0
    %1067 = vmatmul.mubr.f32.gmra.mrb[0].mxu0 %v875
    %v1068 = vpop.f32.mrb[0].mxu0
    %v1069 = vadd.f32 0.0, %v1068
    %v1070 = vpop.f32.mrb[0].mxu0
    %1071 = vmatprep.mubr.f32.mxu0 0.0
    %1072 = vmatmul.mubr.f32.gmra.mrb[0].mxu0 %v878
    %v1073 = vpop.f32.mrb[0].mxu0
    %v1074 = vadd.f32 0.0, %v1073
    %v1075 = vpop.f32.mrb[0].mxu0
    %1076 = vmatprep.mubr.f32.mxu0 0.0
    %1077 = vmatmul.mubr.f32.gmra.mrb[0].mxu0 %v881
    %v1078 = vpop.f32.mrb[0].mxu0
    %v1079 = vadd.f32 0.0, %v1078
    %v1080 = vpop.f32.mrb[0].mxu0
    %1081 = vmatprep.mubr.f32.mxu0 0.0
    %1082 = vmatmul.mubr.f32.gmra.mrb[0].mxu0 %v884
    %v1083 = vpop.f32.mrb[0].mxu0
    %v1084 = vadd.f32 0.0, %v1083
    %v1085 = vpop.f32.mrb[0].mxu0
    %1086 = vmatprep.mubr.f32.mxu0 0.0
    %1087 = vmatmul.mubr.f32.gmra.mrb[0].mxu0 %v887
    %v1088 = vpop.f32.mrb[0].mxu0
    %v1089 = vadd.f32 0.0, %v1088
    %v1090 = vpop.f32.mrb[0].mxu0
    %1091 = vmatprep.mubr.f32.mxu0 0.0
    %1092 = vmatmul.mubr.f32.gmra.mrb[0].mxu0 %v890
    %v1093 = vpop.f32.mrb[0].mxu0
    %v1094 = vadd.f32 0.0, %v1093
    %v1095 = vpop.f32.mrb[0].mxu0
    %1096 = vmatprep.mubr.f32.mxu0 0.0
    %1097 = vmatmul.mubr.f32.gmra.mrb[0].mxu0 %v893
    %v1098 = vpop.f32.mrb[0].mxu0
    %v1099 = vadd.f32 0.0, %v1098
    %v1100 = vpop.f32.mrb[0].mxu0
    %1101 = vmatprep.mubr.f32.mxu0 0.0
    %1102 = vmatmul.mubr.f32.gmra.mrb[0].mxu0 %v896
    %v1103 = vpop.f32.mrb[0].mxu0
    %v1104 = vadd.f32 0.0, %v1103
    %v1105 = vpop.f32.mrb[0].mxu0
    %1106 = vmatprep.mubr.f32.mxu0 0.0
    %1107 = vmatmul.mubr.f32.gmra.mrb[0].mxu0 %v899
    %v1108 = vpop.f32.mrb[0].mxu0
    %v1109 = vadd.f32 0.0, %v1108
    %v1110 = vpop.f32.mrb[0].mxu0
    %1111 = vmatprep.mubr.f32.mxu0 0.0
    %1112 = vmatmul.mubr.f32.gmra.mrb[0].mxu0 %v902
    %v1113 = vpop.f32.mrb[0].mxu0
    %v1114 = vadd.f32 0.0, %v1113
    %v1115 = vpop.f32.mrb[0].mxu0
    %1116 = vmatprep.mubr.f32.mxu0 0.0
    %1117 = vmatmul.mubr.f32.gmra.mrb[0].mxu0 %v905
    %v1118 = vpop.f32.mrb[0].mxu0
    %v1119 = vadd.f32 0.0, %v1118
    %v1120 = vpop.f32.mrb[0].mxu0
    %1121 = vmatprep.mubr.f32.mxu0 0.0
    %1122 = vmatmul.mubr.f32.gmra.mrb[0].mxu0 %v908
    %v1123 = vpop.f32.mrb[0].mxu0
    %v1124 = vadd.f32 0.0, %v1123
    %v1125 = vpop.f32.mrb[0].mxu0
    %1126 = vmatprep.mubr.f32.mxu0 0.0
    %1127 = vmatmul.mubr.f32.gmra.mrb[0].mxu0 %v911
    %v1128 = vpop.f32.mrb[0].mxu0
    %v1129 = vadd.f32 0.0, %v1128
    %v1130 = vpop.f32.mrb[0].mxu0
    %1131 = vmatprep.mubr.f32.mxu0 0.0
    %1132 = vmatmul.mubr.f32.gmra.mrb[0].mxu0 %v914
    %v1133 = vpop.f32.mrb[0].mxu0
    %v1134 = vadd.f32 0.0, %v1133
    %v1135 = vpop.f32.mrb[0].mxu0
    %1136 = vmatprep.mubr.f32.mxu0 0.0
    %1137 = vmatmul.mubr.f32.gmra.mrb[0].mxu0 %v917
    %v1138 = vpop.f32.mrb[0].mxu0
    %v1139 = vadd.f32 0.0, %v1138
    %v1140 = vpop.f32.mrb[0].mxu0
    %1141 = vmatprep.mubr.f32.mxu0 0.0
    %1142 = vmatmul.mubr.f32.gmra.mrb[0].mxu0 %v920
    %v1143 = vpop.f32.mrb[0].mxu0
    %v1144 = vadd.f32 0.0, %v1143
    %v1145 = vpop.f32.mrb[0].mxu0
    %1146 = vdwg.mxu0
    %v1147 = vmul.f32 %v989, %v91
    %v1148 = vmul.f32 %v994, %v92
    %v1149 = vmul.f32 %v999, %v93
    %v1150 = vmul.f32 %v1004, %v94
    %v1151 = vmul.f32 %v1009, %v95
    %v1152 = vmul.f32 %v1014, %v96
    %v1153 = vmul.f32 %v1019, %v97
    %v1154 = vmul.f32 %v1024, %v98
    %v1155 = vmul.f32 %v1029, %v99
    %v1156 = vmul.f32 %v1034, %v100
    %v1157 = vmul.f32 %v1039, %v101
    %v1158 = vmul.f32 %v1044, %v102
    %v1159 = vmul.f32 %v1049, %v103
    %v1160 = vmul.f32 %v1054, %v104
    %v1161 = vmul.f32 %v1059, %v105
    %v1162 = vmul.f32 %v1064, %v106
    %v1163 = vmul.f32 %v1069, %v107
    %v1164 = vmul.f32 %v1074, %v108
    %v1165 = vmul.f32 %v1079, %v109
    %v1166 = vmul.f32 %v1084, %v110
    %v1167 = vmul.f32 %v1089, %v111
    %v1168 = vmul.f32 %v1094, %v112
    %v1169 = vmul.f32 %v1099, %v113
    %v1170 = vmul.f32 %v1104, %v114
    %v1171 = vmul.f32 %v1109, %v115
    %v1172 = vmul.f32 %v1114, %v116
    %v1173 = vmul.f32 %v1119, %v117
    %v1174 = vmul.f32 %v1124, %v118
    %v1175 = vmul.f32 %v1129, %v119
    %v1176 = vmul.f32 %v1134, %v120
    %v1177 = vmul.f32 %v1139, %v121
    %v1178 = vmul.f32 %v1144, %v122
    %1179 = vmatprep.subr.mxu0 0.0
    %1180 = vmatpush1.msra.mxu0 %v1147
    %1181 = vmatprep.subr.mxu0 0.0
    %1182 = vmatpush1.msra.mxu0 %v1148
    %1183 = vmatprep.subr.mxu0 0.0
    %1184 = vmatpush1.msra.mxu0 %v1149
    %1185 = vmatprep.subr.mxu0 0.0
    %1186 = vmatpush1.msra.mxu0 %v1150
    %1187 = vmatprep.subr.mxu0 0.0
    %1188 = vmatpush1.msra.mxu0 %v1151
    %1189 = vmatprep.subr.mxu0 0.0
    %1190 = vmatpush1.msra.mxu0 %v1152
    %1191 = vmatprep.subr.mxu0 0.0
    %1192 = vmatpush1.msra.mxu0 %v1153
    %1193 = vmatprep.subr.mxu0 0.0
    %1194 = vmatpush1.msra.mxu0 %v1154
    %1195 = vmatprep.subr.mxu0 0.0
    %1196 = vmatpush1.msra.mxu0 %v1155
    %1197 = vmatprep.subr.mxu0 0.0
    %1198 = vmatpush1.msra.mxu0 %v1156
    %1199 = vmatprep.subr.mxu0 0.0
    %1200 = vmatpush1.msra.mxu0 %v1157
    %1201 = vmatprep.subr.mxu0 0.0
    %1202 = vmatpush1.msra.mxu0 %v1158
    %1203 = vmatprep.subr.mxu0 0.0
    %1204 = vmatpush1.msra.mxu0 %v1159
    %1205 = vmatprep.subr.mxu0 0.0
    %1206 = vmatpush1.msra.mxu0 %v1160
    %1207 = vmatprep.subr.mxu0 0.0
    %1208 = vmatpush1.msra.mxu0 %v1161
    %1209 = vmatprep.subr.mxu0 0.0
    %1210 = vmatpush1.msra.mxu0 %v1162
    %1211 = vmatprep.subr.mxu0 0.0
    %1212 = vmatpush1.msra.mxu0 %v1163
    %1213 = vmatprep.subr.mxu0 0.0
    %1214 = vmatpush1.msra.mxu0 %v1164
    %1215 = vmatprep.subr.mxu0 0.0
    %1216 = vmatpush1.msra.mxu0 %v1165
    %1217 = vmatprep.subr.mxu0 0.0
    %1218 = vmatpush1.msra.mxu0 %v1166
    %1219 = vmatprep.subr.mxu0 0.0
    %1220 = vmatpush1.msra.mxu0 %v1167
    %1221 = vmatprep.subr.mxu0 0.0
    %1222 = vmatpush1.msra.mxu0 %v1168
    %1223 = vmatprep.subr.mxu0 0.0
    %1224 = vmatpush1.msra.mxu0 %v1169
    %1225 = vmatprep.subr.mxu0 0.0
    %1226 = vmatpush1.msra.mxu0 %v1170
    %1227 = vmatprep.subr.mxu0 0.0
    %1228 = vmatpush1.msra.mxu0 %v1171
    %1229 = vmatprep.subr.mxu0 0.0
    %1230 = vmatpush1.msra.mxu0 %v1172
    %1231 = vmatprep.subr.mxu0 0.0
    %1232 = vmatpush1.msra.mxu0 %v1173
    %1233 = vmatprep.subr.mxu0 0.0
    %1234 = vmatpush1.msra.mxu0 %v1174
    %1235 = vmatprep.subr.mxu0 0.0
    %1236 = vmatpush1.msra.mxu0 %v1175
    %1237 = vmatprep.subr.mxu0 0.0
    %1238 = vmatpush1.msra.mxu0 %v1176
    %1239 = vmatprep.subr.mxu0 0.0
    %1240 = vmatpush1.msra.mxu0 %v1177
    %1241 = vmatprep.subr.mxu0 0.0
    %1242 = vmatpush1.msra.mxu0 %v1178
    %1243 = vmatprep.mubr.f32.mxu0 %v801
    %1244 = vmatmul.mubr.f32.gmra.mrb[0].mxu0 %v799
    %v1245 = vpop.f32.mrb[0].mxu0
    %v1246 = vadd.f32 0.0, %v1245
    %v1247 = vpop.f32.mrb[0].mxu0
    %1248 = vmatprep.mubr.f32.mxu0 %v805
    %1249 = vmatmul.mubr.f32.gmra.mrb[0].mxu0 %v803
    %v1250 = vpop.f32.mrb[0].mxu0
    %v1251 = vadd.f32 0.0, %v1250
    %v1252 = vpop.f32.mrb[0].mxu0
    %1253 = vmatprep.mubr.f32.mxu0 %v809
    %1254 = vmatmul.mubr.f32.gmra.mrb[0].mxu0 %v807
    %v1255 = vpop.f32.mrb[0].mxu0
    %v1256 = vadd.f32 0.0, %v1255
    %v1257 = vpop.f32.mrb[0].mxu0
    %1258 = vmatprep.mubr.f32.mxu0 %v813
    %1259 = vmatmul.mubr.f32.gmra.mrb[0].mxu0 %v811
    %v1260 = vpop.f32.mrb[0].mxu0
    %v1261 = vadd.f32 0.0, %v1260
    %v1262 = vpop.f32.mrb[0].mxu0
    %1263 = vdwg.mxu0
    %1264 = vmatprep.subr.mxu0 0.0
    %1265 = vmatpush1.msra.mxu0 %v91
    %1266 = vmatprep.subr.mxu0 0.0
    %1267 = vmatpush1.msra.mxu0 %v92
    %1268 = vmatprep.subr.mxu0 0.0
    %1269 = vmatpush1.msra.mxu0 %v93
    %1270 = vmatprep.subr.mxu0 0.0
    %1271 = vmatpush1.msra.mxu0 %v94
    %1272 = vmatprep.subr.mxu0 0.0
    %1273 = vmatpush1.msra.mxu0 %v95
    %1274 = vmatprep.subr.mxu0 0.0
    %1275 = vmatpush1.msra.mxu0 %v96
    %1276 = vmatprep.subr.mxu0 0.0
    %1277 = vmatpush1.msra.mxu0 %v97
    %1278 = vmatprep.subr.mxu0 0.0
    %1279 = vmatpush1.msra.mxu0 %v98
    %1280 = vmatprep.subr.mxu0 0.0
    %1281 = vmatpush1.msra.mxu0 %v99
    %1282 = vmatprep.subr.mxu0 0.0
    %1283 = vmatpush1.msra.mxu0 %v100
    %1284 = vmatprep.subr.mxu0 0.0
    %1285 = vmatpush1.msra.mxu0 %v101
    %1286 = vmatprep.subr.mxu0 0.0
    %1287 = vmatpush1.msra.mxu0 %v102
    %1288 = vmatprep.subr.mxu0 0.0
    %1289 = vmatpush1.msra.mxu0 %v103
    %1290 = vmatprep.subr.mxu0 0.0
    %1291 = vmatpush1.msra.mxu0 %v104
    %1292 = vmatprep.subr.mxu0 0.0
    %1293 = vmatpush1.msra.mxu0 %v105
    %1294 = vmatprep.subr.mxu0 0.0
    %1295 = vmatpush1.msra.mxu0 %v106
    %1296 = vmatprep.subr.mxu0 0.0
    %1297 = vmatpush1.msra.mxu0 %v107
    %1298 = vmatprep.subr.mxu0 0.0
    %1299 = vmatpush1.msra.mxu0 %v108
    %1300 = vmatprep.subr.mxu0 0.0
    %1301 = vmatpush1.msra.mxu0 %v109
    %1302 = vmatprep.subr.mxu0 0.0
    %1303 = vmatpush1.msra.mxu0 %v110
    %1304 = vmatprep.subr.mxu0 0.0
    %1305 = vmatpush1.msra.mxu0 %v111
    %1306 = vmatprep.subr.mxu0 0.0
    %1307 = vmatpush1.msra.mxu0 %v112
    %1308 = vmatprep.subr.mxu0 0.0
    %1309 = vmatpush1.msra.mxu0 %v113
    %1310 = vmatprep.subr.mxu0 0.0
    %1311 = vmatpush1.msra.mxu0 %v114
    %1312 = vmatprep.subr.mxu0 0.0
    %1313 = vmatpush1.msra.mxu0 %v115
    %1314 = vmatprep.subr.mxu0 0.0
    %1315 = vmatpush1.msra.mxu0 %v116
    %1316 = vmatprep.subr.mxu0 0.0
    %1317 = vmatpush1.msra.mxu0 %v117
    %1318 = vmatprep.subr.mxu0 0.0
    %1319 = vmatpush1.msra.mxu0 %v118
    %1320 = vmatprep.subr.mxu0 0.0
    %1321 = vmatpush1.msra.mxu0 %v119
    %1322 = vmatprep.subr.mxu0 0.0
    %1323 = vmatpush1.msra.mxu0 %v120
    %1324 = vmatprep.subr.mxu0 0.0
    %1325 = vmatpush1.msra.mxu0 %v121
    %1326 = vmatprep.subr.mxu0 0.0
    %1327 = vmatpush1.msra.mxu0 %v122
    %1328 = vmatprep.mubr.f32.mxu0 %v801
    %1329 = vmatmul.mubr.f32.gmra.mrb[0].mxu0 %v799
    %v1330 = vpop.f32.mrb[0].mxu0
    %v1331 = vadd.f32 0.0, %v1330
    %v1332 = vpop.f32.mrb[0].mxu0
    %1333 = vmatprep.mubr.f32.mxu0 %v805
    %1334 = vmatmul.mubr.f32.gmra.mrb[0].mxu0 %v803
    %v1335 = vpop.f32.mrb[0].mxu0
    %v1336 = vadd.f32 0.0, %v1335
    %v1337 = vpop.f32.mrb[0].mxu0
    %1338 = vmatprep.mubr.f32.mxu0 %v809
    %1339 = vmatmul.mubr.f32.gmra.mrb[0].mxu0 %v807
    %v1340 = vpop.f32.mrb[0].mxu0
    %v1341 = vadd.f32 0.0, %v1340
    %v1342 = vpop.f32.mrb[0].mxu0
    %1343 = vmatprep.mubr.f32.mxu0 %v813
    %1344 = vmatmul.mubr.f32.gmra.mrb[0].mxu0 %v811
    %v1345 = vpop.f32.mrb[0].mxu0
    %v1346 = vadd.f32 0.0, %v1345
    %v1347 = vpop.f32.mrb[0].mxu0
    %1348 = vdwg.mxu0
    %v1349 = vrcp.pop %v1331
    %v1350 = vrcp.pop %v1336
    %v1351 = vrcp.pop %v1341
    %v1352 = vrcp.pop %v1346
    %v1353 = vmul.f32 %v1246, %v1349
    %v1354 = vmul.f32 %v1251, %v1350
    %v1355 = vmul.f32 %v1256, %v1351
    %v1356 = vmul.f32 %v1261, %v1352
    %v1357 = vlaneseq
    %v1358 = vshrl.u32 %v1357, 7
    %v1359 = vsub.s32 5, %v1358
    %v1360 = vrot.slane %v65, %v1359
    %v1362 = vsel %vm265, %v1353, 0
    %v1365 = vsel %vm265, %v1354, 0
    %v1368 = vsel %vm265, %v1355, 0
    %v1371 = vsel %vm265, %v1356, 0
    %1373 = vmatprep.subr.mxu0 0.0
    %1374 = vmatpush1.msra.mxu0 %v41
    %1375 = vmatprep.subr.mxu0 0.0
    %1376 = vmatpush1.msra.mxu0 %v42
    %1377 = vmatprep.subr.mxu0 0.0
    %1378 = vmatpush1.msra.mxu0 %v43
    %1379 = vmatprep.subr.mxu0 0.0
    %1380 = vmatpush1.msra.mxu0 %v44
    %1381 = vmatprep.subr.mxu0 0.0
    %1382 = vmatpush1.msra.mxu0 0.0
    %1383 = vmatprep.subr.mxu0 0.0
    %1384 = vmatpush1.msra.mxu0 0.0
    %1385 = vmatprep.subr.mxu0 0.0
    %1386 = vmatpush1.msra.mxu0 0.0
    %1387 = vmatprep.subr.mxu0 0.0
    %1388 = vmatpush1.msra.mxu0 0.0
    %1389 = vmatprep.subr.mxu0 0.0
    %1390 = vmatpush1.msra.mxu0 0.0
    %1391 = vmatprep.subr.mxu0 0.0
    %1392 = vmatpush1.msra.mxu0 0.0
    %1393 = vmatprep.subr.mxu0 0.0
    %1394 = vmatpush1.msra.mxu0 0.0
    %1395 = vmatprep.subr.mxu0 0.0
    %1396 = vmatpush1.msra.mxu0 0.0
    %1397 = vmatprep.subr.mxu0 0.0
    %1398 = vmatpush1.msra.mxu0 0.0
    %1399 = vmatprep.subr.mxu0 0.0
    %1400 = vmatpush1.msra.mxu0 0.0
    %1401 = vmatprep.subr.mxu0 0.0
    %1402 = vmatpush1.msra.mxu0 0.0
    %1403 = vmatprep.subr.mxu0 0.0
    %1404 = vmatpush1.msra.mxu0 0.0
    %1405 = vmatprep.subr.mxu0 0.0
    %1406 = vmatpush1.msra.mxu0 0.0
    %1407 = vmatprep.subr.mxu0 0.0
    %1408 = vmatpush1.msra.mxu0 0.0
    %1409 = vmatprep.subr.mxu0 0.0
    %1410 = vmatpush1.msra.mxu0 0.0
    %1411 = vmatprep.subr.mxu0 0.0
    %1412 = vmatpush1.msra.mxu0 0.0
    %1413 = vmatprep.subr.mxu0 0.0
    %1414 = vmatpush1.msra.mxu0 0.0
    %1415 = vmatprep.subr.mxu0 0.0
    %1416 = vmatpush1.msra.mxu0 0.0
    %1417 = vmatprep.subr.mxu0 0.0
    %1418 = vmatpush1.msra.mxu0 0.0
    %1419 = vmatprep.subr.mxu0 0.0
    %1420 = vmatpush1.msra.mxu0 0.0
    %1421 = vmatprep.subr.mxu0 0.0
    %1422 = vmatpush1.msra.mxu0 0.0
    %1423 = vmatprep.subr.mxu0 0.0
    %1424 = vmatpush1.msra.mxu0 0.0
    %1425 = vmatprep.subr.mxu0 0.0
    %1426 = vmatpush1.msra.mxu0 0.0
    %1427 = vmatprep.subr.mxu0 0.0
    %1428 = vmatpush1.msra.mxu0 0.0
    %1429 = vmatprep.subr.mxu0 0.0
    %1430 = vmatpush1.msra.mxu0 0.0
    %1431 = vmatprep.subr.mxu0 0.0
    %1432 = vmatpush1.msra.mxu0 0.0
    %1433 = vmatprep.subr.mxu0 0.0
    %1434 = vmatpush1.msra.mxu0 0.0
    %1435 = vmatprep.subr.mxu0 0.0
    %1436 = vmatpush1.msra.mxu0 0.0
    %1437 = vmatprep.mubr.f32.mxu0 0.0
    %1438 = vmatmul.mubr.f32.gmra.mrb[0].mxu0 %v1362
    %v1439 = vpop.f32.mrb[0].mxu0
    %v1440 = vadd.f32 %v1360, %v1439
    %v1441 = vpop.f32.mrb[0].mxu0
    %1442 = vmatprep.mubr.f32.mxu0 0.0
    %1443 = vmatmul.mubr.f32.gmra.mrb[0].mxu0 %v1365
    %v1444 = vpop.f32.mrb[0].mxu0
    %v1445 = vadd.f32 %v1360, %v1444
    %v1446 = vpop.f32.mrb[0].mxu0
    %1447 = vmatprep.mubr.f32.mxu0 0.0
    %1448 = vmatmul.mubr.f32.gmra.mrb[0].mxu0 %v1368
    %v1449 = vpop.f32.mrb[0].mxu0
    %v1450 = vadd.f32 %v1360, %v1449
    %v1451 = vpop.f32.mrb[0].mxu0
    %1452 = vmatprep.mubr.f32.mxu0 0.0
    %1453 = vmatmul.mubr.f32.gmra.mrb[0].mxu0 %v1371
    %v1454 = vpop.f32.mrb[0].mxu0
    %v1455 = vadd.f32 %v1360, %v1454
    %v1456 = vpop.f32.mrb[0].mxu0
    %1457 = vdwg.mxu0
    %v1458 = vadd.f32 %v24, %v1440
    %v1459 = vadd.f32 %v25, %v1445
    %v1460 = vadd.f32 %v26, %v1450
    %v1461 = vadd.f32 %v27, %v1455
    %1462 = vadd.xlane.f32.xlu0 %v1458
    %v1463 = vpop.xlane.xlu0 %1462
    %1464 = vadd.xlane.f32.xlu0 %v1459
    %v1465 = vpop.xlane.xlu0 %1464
    %1466 = vadd.xlane.f32.xlu0 %v1460
    %v1467 = vpop.xlane.xlu0 %1466
    %1468 = vadd.xlane.f32.xlu0 %v1461
    %v1469 = vpop.xlane.xlu0 %1468
    %v1470 = vmul.f32 %v1463, 0.03125
    %v1471 = vmul.f32 %v1465, 0.03125
    %v1472 = vmul.f32 %v1467, 0.03125
    %v1473 = vmul.f32 %v1469, 0.03125
    %v1474 = vsub.f32 %v1458, %v1470
    %v1475 = vsub.f32 %v1459, %v1471
    %v1476 = vsub.f32 %v1460, %v1472
    %v1477 = vsub.f32 %v1461, %v1473
    %v1478 = vmul.f32 %v1474, %v382
    %v1479 = vmul.f32 %v1475, %v382
    %v1480 = vmul.f32 %v1476, %v382
    %v1481 = vmul.f32 %v1477, %v382
    %v1482 = vmul.f32 %v1478, %v1478
    %v1483 = vmul.f32 %v1479, %v1479
    %v1484 = vmul.f32 %v1480, %v1480
    %v1485 = vmul.f32 %v1481, %v1481
    %1486 = vadd.xlane.f32.xlu0 %v1482
    %v1487 = vpop.xlane.xlu0 %1486
    %1488 = vadd.xlane.f32.xlu0 %v1483
    %v1489 = vpop.xlane.xlu0 %1488
    %1490 = vadd.xlane.f32.xlu0 %v1484
    %v1491 = vpop.xlane.xlu0 %1490
    %1492 = vadd.xlane.f32.xlu0 %v1485
    %v1493 = vpop.xlane.xlu0 %1492
    %v1494 = vmul.f32 %v1487, 0.03125
    %v1495 = vmul.f32 %v1489, 0.03125
    %v1496 = vmul.f32 %v1491, 0.03125
    %v1497 = vmul.f32 %v1493, 0.03125
    %v1498 = vadd.f32 %v1494, 1e-05
    %v1499 = vadd.f32 %v1495, 1e-05
    %v1500 = vadd.f32 %v1496, 1e-05
    %v1501 = vadd.f32 %v1497, 1e-05
    %v1502 = vrsqrt.pop %v1498
    %v1503 = vrsqrt.pop %v1499
    %v1504 = vrsqrt.pop %v1500
    %v1505 = vrsqrt.pop %v1501
    %v1506 = vmul.f32 %v1478, %v1502
    %v1507 = vmul.f32 %v1479, %v1503
    %v1508 = vmul.f32 %v1480, %v1504
    %v1509 = vmul.f32 %v1481, %v1505
    %v1510 = vlaneseq
    %v1511 = vshrl.u32 %v1510, 7
    %v1512 = vsub.s32 6, %v1511
    %v1513 = vrot.slane %v65, %v1512
    %v1514 = vmul.f32 %v1506, %v1513
    %v1515 = vmul.f32 %v1507, %v1513
    %v1516 = vmul.f32 %v1508, %v1513
    %v1517 = vmul.f32 %v1509, %v1513
    %v1518 = vlaneseq
    %v1519 = vshrl.u32 %v1518, 7
    %v1520 = vsub.s32 7, %v1519
    %v1521 = vrot.slane %v65, %v1520
    %v1522 = vadd.f32 %v1514, %v1521
    %v1523 = vadd.f32 %v1515, %v1521
    %v1524 = vadd.f32 %v1516, %v1521
    %v1525 = vadd.f32 %v1517, %v1521
    %v1526 = vlaneseq
    %v1527 = vshrl.u32 %v1526, 7
    %v1528 = vsub.s32 0, %v1527
    %v1529 = vrot.slane %v66, %v1528
    %v1531 = vsel %vm265, %v1522, 0
    %v1534 = vsel %vm265, %v1523, 0
    %v1537 = vsel %vm265, %v1524, 0
    %v1540 = vsel %vm265, %v1525, 0
    %1542 = vmatprep.subr.mxu0 0.0
    %1543 = vmatpush1.msra.mxu0 %v45
    %1544 = vmatprep.subr.mxu0 0.0
    %1545 = vmatpush1.msra.mxu0 %v46
    %1546 = vmatprep.subr.mxu0 0.0
    %1547 = vmatpush1.msra.mxu0 %v47
    %1548 = vmatprep.subr.mxu0 0.0
    %1549 = vmatpush1.msra.mxu0 %v48
    %1550 = vmatprep.subr.mxu0 0.0
    %1551 = vmatpush1.msra.mxu0 0.0
    %1552 = vmatprep.subr.mxu0 0.0
    %1553 = vmatpush1.msra.mxu0 0.0
    %1554 = vmatprep.subr.mxu0 0.0
    %1555 = vmatpush1.msra.mxu0 0.0
    %1556 = vmatprep.subr.mxu0 0.0
    %1557 = vmatpush1.msra.mxu0 0.0
    %1558 = vmatprep.subr.mxu0 0.0
    %1559 = vmatpush1.msra.mxu0 0.0
    %1560 = vmatprep.subr.mxu0 0.0
    %1561 = vmatpush1.msra.mxu0 0.0
    %1562 = vmatprep.subr.mxu0 0.0
    %1563 = vmatpush1.msra.mxu0 0.0
    %1564 = vmatprep.subr.mxu0 0.0
    %1565 = vmatpush1.msra.mxu0 0.0
    %1566 = vmatprep.subr.mxu0 0.0
    %1567 = vmatpush1.msra.mxu0 0.0
    %1568 = vmatprep.subr.mxu0 0.0
    %1569 = vmatpush1.msra.mxu0 0.0
    %1570 = vmatprep.subr.mxu0 0.0
    %1571 = vmatpush1.msra.mxu0 0.0
    %1572 = vmatprep.subr.mxu0 0.0
    %1573 = vmatpush1.msra.mxu0 0.0
    %1574 = vmatprep.subr.mxu0 0.0
    %1575 = vmatpush1.msra.mxu0 0.0
    %1576 = vmatprep.subr.mxu0 0.0
    %1577 = vmatpush1.msra.mxu0 0.0
    %1578 = vmatprep.subr.mxu0 0.0
    %1579 = vmatpush1.msra.mxu0 0.0
    %1580 = vmatprep.subr.mxu0 0.0
    %1581 = vmatpush1.msra.mxu0 0.0
    %1582 = vmatprep.subr.mxu0 0.0
    %1583 = vmatpush1.msra.mxu0 0.0
    %1584 = vmatprep.subr.mxu0 0.0
    %1585 = vmatpush1.msra.mxu0 0.0
    %1586 = vmatprep.subr.mxu0 0.0
    %1587 = vmatpush1.msra.mxu0 0.0
    %1588 = vmatprep.subr.mxu0 0.0
    %1589 = vmatpush1.msra.mxu0 0.0
    %1590 = vmatprep.subr.mxu0 0.0
    %1591 = vmatpush1.msra.mxu0 0.0
    %1592 = vmatprep.subr.mxu0 0.0
    %1593 = vmatpush1.msra.mxu0 0.0
    %1594 = vmatprep.subr.mxu0 0.0
    %1595 = vmatpush1.msra.mxu0 0.0
    %1596 = vmatprep.subr.mxu0 0.0
    %1597 = vmatpush1.msra.mxu0 0.0
    %1598 = vmatprep.subr.mxu0 0.0
    %1599 = vmatpush1.msra.mxu0 0.0
    %1600 = vmatprep.subr.mxu0 0.0
    %1601 = vmatpush1.msra.mxu0 0.0
    %1602 = vmatprep.subr.mxu0 0.0
    %1603 = vmatpush1.msra.mxu0 0.0
    %1604 = vmatprep.subr.mxu0 0.0
    %1605 = vmatpush1.msra.mxu0 0.0
    %1606 = vmatprep.mubr.f32.mxu0 0.0
    %1607 = vmatmul.mubr.f32.gmra.mrb[0].mxu0 %v1531
    %v1608 = vpop.f32.mrb[0].mxu0
    %v1609 = vadd.f32 %v1529, %v1608
    %v1610 = vpop.f32.mrb[0].mxu0
    %1611 = vmatprep.mubr.f32.mxu0 0.0
    %1612 = vmatmul.mubr.f32.gmra.mrb[0].mxu0 %v1534
    %v1613 = vpop.f32.mrb[0].mxu0
    %v1614 = vadd.f32 %v1529, %v1613
    %v1615 = vpop.f32.mrb[0].mxu0
    %1616 = vmatprep.mubr.f32.mxu0 0.0
    %1617 = vmatmul.mubr.f32.gmra.mrb[0].mxu0 %v1537
    %v1618 = vpop.f32.mrb[0].mxu0
    %v1619 = vadd.f32 %v1529, %v1618
    %v1620 = vpop.f32.mrb[0].mxu0
    %1621 = vmatprep.mubr.f32.mxu0 0.0
    %1622 = vmatmul.mubr.f32.gmra.mrb[0].mxu0 %v1540
    %v1623 = vpop.f32.mrb[0].mxu0
    %v1624 = vadd.f32 %v1529, %v1623
    %v1625 = vpop.f32.mrb[0].mxu0
    %1626 = vdwg.mxu0
    %v1627 = vmax.f32 %v1609, 0.0
    %v1628 = vmax.f32 %v1614, 0.0
    %v1629 = vmax.f32 %v1619, 0.0
    %v1630 = vmax.f32 %v1624, 0.0
    %v1631 = vlaneseq
    %v1632 = vshrl.u32 %v1631, 7
    %v1633 = vsub.s32 1, %v1632
    %v1634 = vrot.slane %v66, %v1633
    %1635 = vmatprep.subr.mxu0 0.0
    %1636 = vmatpush1.msra.mxu0 %v49
    %1637 = vmatprep.subr.mxu0 0.0
    %1638 = vmatpush1.msra.mxu0 %v50
    %1639 = vmatprep.subr.mxu0 0.0
    %1640 = vmatpush1.msra.mxu0 %v51
    %1641 = vmatprep.subr.mxu0 0.0
    %1642 = vmatpush1.msra.mxu0 %v52
    %1643 = vmatprep.subr.mxu0 0.0
    %1644 = vmatpush1.msra.mxu0 %v53
    %1645 = vmatprep.subr.mxu0 0.0
    %1646 = vmatpush1.msra.mxu0 %v54
    %1647 = vmatprep.subr.mxu0 0.0
    %1648 = vmatpush1.msra.mxu0 %v55
    %1649 = vmatprep.subr.mxu0 0.0
    %1650 = vmatpush1.msra.mxu0 %v56
    %1651 = vmatprep.subr.mxu0 0.0
    %1652 = vmatpush1.msra.mxu0 %v57
    %1653 = vmatprep.subr.mxu0 0.0
    %1654 = vmatpush1.msra.mxu0 %v58
    %1655 = vmatprep.subr.mxu0 0.0
    %1656 = vmatpush1.msra.mxu0 %v59
    %1657 = vmatprep.subr.mxu0 0.0
    %1658 = vmatpush1.msra.mxu0 %v60
    %1659 = vmatprep.subr.mxu0 0.0
    %1660 = vmatpush1.msra.mxu0 %v61
    %1661 = vmatprep.subr.mxu0 0.0
    %1662 = vmatpush1.msra.mxu0 %v62
    %1663 = vmatprep.subr.mxu0 0.0
    %1664 = vmatpush1.msra.mxu0 %v63
    %1665 = vmatprep.subr.mxu0 0.0
    %1666 = vmatpush1.msra.mxu0 %v64
    %1667 = vmatprep.subr.mxu0 0.0
    %1668 = vmatpush1.msra.mxu0 0.0
    %1669 = vmatprep.subr.mxu0 0.0
    %1670 = vmatpush1.msra.mxu0 0.0
    %1671 = vmatprep.subr.mxu0 0.0
    %1672 = vmatpush1.msra.mxu0 0.0
    %1673 = vmatprep.subr.mxu0 0.0
    %1674 = vmatpush1.msra.mxu0 0.0
    %1675 = vmatprep.subr.mxu0 0.0
    %1676 = vmatpush1.msra.mxu0 0.0
    %1677 = vmatprep.subr.mxu0 0.0
    %1678 = vmatpush1.msra.mxu0 0.0
    %1679 = vmatprep.subr.mxu0 0.0
    %1680 = vmatpush1.msra.mxu0 0.0
    %1681 = vmatprep.subr.mxu0 0.0
    %1682 = vmatpush1.msra.mxu0 0.0
    %1683 = vmatprep.subr.mxu0 0.0
    %1684 = vmatpush1.msra.mxu0 0.0
    %1685 = vmatprep.subr.mxu0 0.0
    %1686 = vmatpush1.msra.mxu0 0.0
    %1687 = vmatprep.subr.mxu0 0.0
    %1688 = vmatpush1.msra.mxu0 0.0
    %1689 = vmatprep.subr.mxu0 0.0
    %1690 = vmatpush1.msra.mxu0 0.0
    %1691 = vmatprep.subr.mxu0 0.0
    %1692 = vmatpush1.msra.mxu0 0.0
    %1693 = vmatprep.subr.mxu0 0.0
    %1694 = vmatpush1.msra.mxu0 0.0
    %1695 = vmatprep.subr.mxu0 0.0
    %1696 = vmatpush1.msra.mxu0 0.0
    %1697 = vmatprep.subr.mxu0 0.0
    %1698 = vmatpush1.msra.mxu0 0.0
    %1699 = vmatprep.mubr.f32.mxu0 0.0
    %1700 = vmatmul.mubr.f32.gmra.mrb[0].mxu0 %v1627
    %v1701 = vpop.f32.mrb[0].mxu0
    %v1702 = vadd.f32 %v1634, %v1701
    %v1703 = vpop.f32.mrb[0].mxu0
    %1704 = vmatprep.mubr.f32.mxu0 0.0
    %1705 = vmatmul.mubr.f32.gmra.mrb[0].mxu0 %v1628
    %v1706 = vpop.f32.mrb[0].mxu0
    %v1707 = vadd.f32 %v1634, %v1706
    %v1708 = vpop.f32.mrb[0].mxu0
    %1709 = vmatprep.mubr.f32.mxu0 0.0
    %1710 = vmatmul.mubr.f32.gmra.mrb[0].mxu0 %v1629
    %v1711 = vpop.f32.mrb[0].mxu0
    %v1712 = vadd.f32 %v1634, %v1711
    %v1713 = vpop.f32.mrb[0].mxu0
    %1714 = vmatprep.mubr.f32.mxu0 0.0
    %1715 = vmatmul.mubr.f32.gmra.mrb[0].mxu0 %v1630
    %v1716 = vpop.f32.mrb[0].mxu0
    %v1717 = vadd.f32 %v1634, %v1716
    %v1718 = vpop.f32.mrb[0].mxu0
    %1719 = vdwg.mxu0
    %v1720 = vadd.f32 %v1458, %v1702
    %v1721 = vadd.f32 %v1459, %v1707
    %v1722 = vadd.f32 %v1460, %v1712
    %v1723 = vadd.f32 %v1461, %v1717
    %1724 = vst [vmem:[#allocation2] sm:$0xff] %v1720
    %1725 = vst [vmem:[#allocation2 + $0x8] sm:$0xff] %v1721
    %1726 = vst [vmem:[#allocation2 + $0x10] sm:$0xff] %v1722
    %1727 = vst [vmem:[#allocation2 + $0x18] sm:$0xff] %v1723
    // Predicated region
    $region26: #{tpu_custom_call.1} parent=1 // pred_check
      _
    $region27: #{tpu_custom_call.1} parent=1 // pred_check_branch
      %1729 = sbr.rel (0) target = $region29
    $region28: #{tpu_custom_call.1} parent=1 // pred_region
      %s1731 = ssub.s32 512, 512
      %1732 = vsyncadd [#allocation3], %s1731
      %s1733 = sshll.u32 [#allocation2], 4
      %s1734 = int_to_ptr.vmem [resolvable:$true] %s1733
      %1739 = dma.vmem_to_hbm [thread:$0]  %s1734, 512, %s6, [#allocation3], 128, 128, 8
    $region29: #{tpu_custom_call.1} parent=1 // pred_fallthru
      _
    // Predicated region
    $region30: #{tpu_custom_call.1} parent=1 // pred_check
      _
    $region31: #{tpu_custom_call.1} parent=1 // pred_check_branch
      %1741 = sbr.rel (0) target = $region33
    $region32: #{tpu_custom_call.1} parent=1 // pred_region
      %1742 = dma.done [#allocation3], 512
    $region33: #{tpu_custom_call.1} parent=1 // pred_fallthru
      _
    %1743 = vsyncpa [#allocation3], 1

</llo_original>
